<compile_context>
chip_gen: v5e
topology: v5e:2x2
jax: 0.10.0
libtpu: 0.0.40
codegen_flags: <defaults>
</compile_context>

<pallas_src>
import functools
import math

import jax
import jax.numpy as jnp
from jax.experimental import pallas as pl
from jax.experimental.pallas import tpu as pltpu

_LANE = 128
_SUBLANE = 8
_FUSE_MAX_KKC = 256  # fuse all K*K taps into one matmul iff K*K*Cin <= this


def _round_up(x, m):
    return -(-x // m) * m


def _vmem_capacity_bytes():
    """Physical VMEM capacity (per TensorCore); conservative default = v7x."""
    try:
        return int(pltpu.get_tpu_info().vmem_capacity_bytes)
    except Exception:
        return 64 * 1024 * 1024


def _est_vmem_bytes(rc, pitch, *, P, Cin, Cout, K, s, in_itemsize):
    """Rough per-step VMEM footprint: 2x pipelined input/output/weight blocks
    plus in-kernel im2col temporaries and the f32 accumulator."""
    halo = (K - 1) // s
    KKC = K * K * Cin
    n = rc * pitch
    band = _round_up((rc + halo) * pitch + halo, _LANE)
    in_blk = _round_up(P, _SUBLANE) * band * in_itemsize
    out_blk = _round_up(Cout, _SUBLANE) * _round_up(n, _LANE) * 4
    w_blk = _round_up(Cout, _SUBLANE) * _round_up(KKC, _LANE) * in_itemsize
    depth = KKC if KKC <= _FUSE_MAX_KKC else K * Cin
    tmp = (2 * depth * in_itemsize + (_round_up(Cout, _SUBLANE) + _SUBLANE) * 4) * n
    return 2 * (in_blk + out_blk + w_blk) + tmp


def _choose_tiling(Ho, Wph, batch, est_bytes, budget):
    """Pick (row_chunk RC, padded spatial row pitch).

    Constraints/preferences: RC divides Ho; RC*pitch is a multiple of 128
    (lane-dense, unmasked output stores) unless RC == Ho; the estimated
    double-buffered blocks fit `budget`; prefer >=2 total grid programs (v7x
    has two TensorCores), big tiles (amortise ~0.35us/step grid overhead) and
    minimal pitch padding.
    """
    best_fit = None
    best_any = None  # minimal-footprint valid config (fallback if over budget)
    for align in (_SUBLANE, 32, _LANE):
        pitch = _round_up(Wph, align)
        for rc in range(1, Ho + 1):
            if Ho % rc:
                continue
            if (rc * pitch) % _LANE != 0 and rc != Ho:
                continue
            cost = est_bytes(rc, pitch)
            if best_any is None or cost < best_any[0]:
                best_any = (cost, rc, pitch)
            if cost > budget:
                continue
            multi = (batch >= 2) or (Ho // rc >= 2)
            big = rc * pitch >= 2048
            key = (multi, big, rc, -pitch)
            if best_fit is None or key > best_fit[0]:
                best_fit = (key, rc, pitch)
    if best_fit is not None:
        return best_fit[1], best_fit[2]
    # TODO(synk): when nothing fits the VMEM budget (huge rows x channels) fall
    # back to the smallest valid tile; a masked last tile would allow RC values
    # that do not divide Ho and keep tiles small without whole-image fallback.
    return best_any[1], best_any[2]


def _make_conv_kernel(K, stride, RC, pitch, Cin, Cout, fuse):
    s = stride
    KC = K * Cin
    n = RC * pitch

    def kernel(x_ref, w_ref, b_ref, o_ref):
        # x_ref: (1, 1, s*s*Cin, Lb)  channel-major, spatially flattened row band
        # w_ref: (Cout, K*K*Cin)      transposed im2col weights, (kh,kw,cin) cols
        # b_ref: (Cout, 1)
        # o_ref: (1, Cout, RC*pitch)  lane-dense, channel-major output tile
        w = w_ref[...]

        def tap(kh, kw):
            # One contiguous lane-dim slice per tap: no in-kernel reshape.
            qh, ph = kh // s, kh % s
            qw, pw = kw // s, kw % s
            c0 = (ph * s + pw) * Cin
            start = qh * pitch + qw
            return x_ref[0, 0, c0:c0 + Cin, start:start + n]  # (Cin, RC*pitch)

        def contract(w_cols, taps):
            patches = taps[0] if len(taps) == 1 else jnp.concatenate(taps, axis=0)
            # (Cout, depth) x (depth, RC*pitch) -> (Cout, RC*pitch): MXU emits
            # the transposed (channel-major) tile directly, N dim lane-dense.
            return jax.lax.dot_general(
                w_cols, patches, (((1,), (0,)), ((), ())),
                preferred_element_type=jnp.float32)

        if fuse:
            acc = contract(w, [tap(kh, kw) for kh in range(K) for kw in range(K)])
        else:
            # Large Cin: per-kh partial matmuls (depth K*Cin), f32 accumulation,
            # avoids materialising the full (K*K*Cin, RC*pitch) im2col buffer.
            acc = None
            for kh in range(K):
                part = contract(w[:, kh * KC:(kh + 1) * KC],
                                [tap(kh, kw) for kw in range(K)])
                acc = part if acc is None else acc + part

        acc = acc + b_ref[...]                       # lane broadcast of bias
        o_ref[0, :, :] = acc.astype(o_ref.dtype)     # unmasked, lane-dense store

    return kernel


def conv_layer(x, weight, bias, *, stride, compute_dtype=jnp.float32):
    """PyTorch ConvLayer forward: ReflectionPad2d(K//2) + Conv2d(Cin,Cout,K,stride).

    x:      (B, Cin, H, W)  NCHW float32
    weight: (K, K, Cin, Cout) HWIO  (= torch_weight.permute(2, 3, 1, 0))
    bias:   (Cout,)
    returns (B, Cout, Ho, Wo) NCHW float32

    compute_dtype: MXU operand dtype (f32 default for parity with the PyTorch
    module; pass jnp.bfloat16 on v6e/v7x for the native fast path -- the
    accumulation stays f32 either way).
    """
    B, Cin, H, W = map(int, x.shape)
    K = int(weight.shape[0])
    Cout = int(weight.shape[-1])
    s = int(stride)
    pad = K // 2

    xpad = x
    if pad:
        xpad = jnp.pad(x, ((0, 0), (0, 0), (pad, pad), (pad, pad)), mode="reflect")
    Hp, Wp = H + 2 * pad, W + 2 * pad
    Ho = (Hp - K) // s + 1
    Wo = (Wp - K) // s + 1
    halo = (K - 1) // s
    Hph, Wph = Ho + halo, Wo + halo
    s2 = s * s
    P = s2 * Cin
    KKC = K * K * Cin

    in_itemsize = jnp.dtype(compute_dtype).itemsize
    cap = _vmem_capacity_bytes()
    est = functools.partial(_est_vmem_bytes, P=P, Cin=Cin, Cout=Cout, K=K, s=s,
                            in_itemsize=in_itemsize)
    RC, pitch = _choose_tiling(Ho, Wph, B, est, budget=int(cap * 0.4))
    n_rt = Ho // RC
    # Size-aware scoped-VMEM limit (3x the block estimate, capped with headroom).
    vmem_limit = int(min(cap * 17 // 20, max(32 * 1024 * 1024, est(RC, pitch) * 3)))

    # Polyphase (space-to-batch) split, channel-major: output (i, j) with tap
    # (kh, kw) reads phase (kh % s, kw % s) at (i + kh//s, j + kw//s), so the
    # kernel computes the stride-s output directly from contiguous slices.
    if s == 1:
        x_ph = xpad                                        # (B, Cin, Hp, Wp)
    else:
        phases = []
        for ph in range(s):
            for pw in range(s):
                xp = xpad[:, :, ph::s, pw::s][:, :, :Hph, :Wph]
                dh, dw = Hph - xp.shape[2], Wph - xp.shape[3]
                if dh or dw:  # uniform phase shape; pads never feed valid outputs
                    xp = jnp.pad(xp, ((0, 0), (0, 0), (0, dh), (0, dw)))
                phases.append(xp)
        x_ph = jnp.concatenate(phases, axis=1)             # (B, s2*Cin, Hph, Wph)

    # Pad each spatial row to `pitch` and flatten H,W so every in-kernel tap
    # gather is a plain lane-dim slice (no reshape / relayout in the kernel).
    if pitch > Wph:
        x_ph = jnp.pad(x_ph, ((0, 0), (0, 0), (0, 0), (0, pitch - Wph)))
    x_flat = x_ph.reshape(B, P, Hph * pitch)

    # Row-band the flattened image in the wrapper (halo rows duplicated) so a
    # grid step only keeps O(RC) rows resident in VMEM and the bands pipeline
    # as ordinary disjoint BlockSpec blocks (fits v7x's 64 MiB per-TC VMEM).
    Lb = _round_up((RC + halo) * pitch + halo, _LANE)
    need = (n_rt - 1) * RC * pitch + Lb
    if need > Hph * pitch:
        x_flat = jnp.pad(x_flat, ((0, 0), (0, 0), (0, need - Hph * pitch)))
    x_band = jnp.stack(
        [x_flat[:, :, r * RC * pitch:r * RC * pitch + Lb] for r in range(n_rt)],
        axis=1).astype(compute_dtype)                      # (B, n_rt, P, Lb)

    # Transposed im2col weights: (Cout, KKC) with columns in (kh, kw, cin) order.
    w_t = jnp.transpose(weight.reshape(KKC, Cout)).astype(compute_dtype)
    b_col = bias.reshape(Cout, 1).astype(jnp.float32)

    fuse = KKC <= _FUSE_MAX_KKC
    flops = 2 * B * Ho * pitch * KKC * Cout
    bytes_accessed = int(x_band.size * in_itemsize + w_t.size * in_itemsize
                         + b_col.size * 4 + B * Cout * Ho * pitch * 4)

    out = pl.pallas_call(
        _make_conv_kernel(K, s, RC, pitch, Cin, Cout, fuse),
        out_shape=jax.ShapeDtypeStruct((B, Cout, Ho * pitch), jnp.float32),
        grid=(B, n_rt),
        in_specs=[
            pl.BlockSpec((1, 1, P, Lb), lambda b, r: (b, r, 0, 0)),
            pl.BlockSpec((Cout, KKC), lambda b, r: (0, 0)),
            pl.BlockSpec((Cout, 1), lambda b, r: (0, 0)),
        ],
        out_specs=pl.BlockSpec((1, Cout, RC * pitch), lambda b, r: (b, 0, r)),
        compiler_params=pltpu.CompilerParams(
            dimension_semantics=("parallel", "parallel"),
            vmem_limit_bytes=vmem_limit,
        ),
        cost_estimate=pl.CostEstimate(
            flops=flops, transcendentals=0, bytes_accessed=bytes_accessed),
    )(x_band, w_t, b_col)

    # Output is already channel-major in HBM; just drop the junk pitch columns.
    return out.reshape(B, Cout, Ho, pitch)[:, :, :, :Wo]


# ---------------------------------------------------------------------------
# Reference (pure XLA) implementation of the same module, for verification.
# ---------------------------------------------------------------------------
def _reference(x, weight, bias, *, stride):
    K = weight.shape[0]
    pad = K // 2
    xh = jnp.transpose(x, (0, 2, 3, 1))
    if pad:
        xh = jnp.pad(xh, ((0, 0), (pad, pad), (pad, pad), (0, 0)),
                     mode="reflect")
    out = jax.lax.conv_general_dilated(
        xh, weight, window_strides=(stride, stride), padding="VALID",
        dimension_numbers=("NHWC", "HWIO", "NHWC"),
        precision=jax.lax.Precision.HIGHEST)
    out = out + bias[None, None, None, :]
    return jnp.transpose(out, (0, 3, 1, 2))


def _run_case(name, key, *, B, Cin, Cout, H, W, K, stride, compute_dtype, tol):
    kx, kw, kb = jax.random.split(key, 3)
    x = jax.random.normal(kx, (B, Cin, H, W), jnp.float32)
    w = jax.random.normal(kw, (K, K, Cin, Cout), jnp.float32) / math.sqrt(K * K * Cin)
    b = 0.1 * jax.random.normal(kb, (Cout,), jnp.float32)

    fwd = jax.jit(functools.partial(conv_layer, stride=stride,
                                    compute_dtype=compute_dtype))
    out = jax.block_until_ready(fwd(x, w, b))
    ref = _reference(x, w, b, stride=stride)
    assert out.shape == ref.shape, (name, out.shape, ref.shape)
    err = float(jnp.max(jnp.abs(out - ref)))
    assert err < tol, f"{name}: max abs err {err} >= {tol}"
    return err


if __name__ == "__main__":
    root = jax.random.PRNGKey(0)
    # 3x3, stride 1, f32 MXU path (parity default).
    _run_case("k3_s1_f32", jax.random.fold_in(root, 0),
              B=2, Cin=3, Cout=32, H=32, W=32, K=3, stride=1,
              compute_dtype=jnp.float32, tol=2e-3)
    # 5x5, stride 2: direct strided conv via the polyphase split, larger Cin.
    _run_case("k5_s2_f32", jax.random.fold_in(root, 1),
              B=2, Cin=8, Cout=64, H=32, W=32, K=5, stride=2,
              compute_dtype=jnp.float32, tol=2e-3)
    # bf16 MXU operands with f32 accumulation (v6e/v7x-native fast path).
    _run_case("k3_s1_bf16", jax.random.fold_in(root, 2),
              B=2, Cin=3, Cout=32, H=16, W=16, K=3, stride=1,
              compute_dtype=jnp.bfloat16, tol=1e-1)
    print("KERNEL_OK")
</pallas_src>

<mosaic_0001>
module attributes {stable_mosaic.version = 11 : i64} {
  func.func @kernel(%arg0: i32, %arg1: i32, %arg2: memref<1x1x3x2304xf32, #tpu.memory_space<vmem>>, %arg3: memref<32x27xf32, #tpu.memory_space<vmem>>, %arg4: memref<32x1xf32, #tpu.memory_space<vmem>>, %arg5: memref<1x32x2048xf32, #tpu.memory_space<vmem>>) attributes {dimension_semantics = [#tpu.dimension_semantics<parallel>, #tpu.dimension_semantics<parallel>], iteration_bounds = array<i64: 2, 1>, scalar_prefetch = 0 : i64, scratch_operands = 0 : i64, tpu.core_type = #tpu.core_type<tc>, window_params = [{transform_indices = @transform_0, window_bounds = array<i64: 1, 1, 3, 2304>}, {pipeline_mode = #tpu.pipeline_mode<synchronous>, transform_indices = @transform_1, window_bounds = array<i64: 32, 27>}, {pipeline_mode = #tpu.pipeline_mode<synchronous>, transform_indices = @transform_2, window_bounds = array<i64: 32, 1>}, {transform_indices = @transform_3, window_bounds = array<i64: 1, 32, 2048>}]} {
    %c0 = arith.constant 0 : index
    %c0_0 = arith.constant 0 : index
    %0 = vector.load %arg3[%c0, %c0_0] : memref<32x27xf32, #tpu.memory_space<vmem>>, vector<32x27xf32>
    %c0_1 = arith.constant 0 : index
    %c0_2 = arith.constant 0 : index
    %c0_3 = arith.constant 0 : index
    %c0_4 = arith.constant 0 : index
    %1 = vector.load %arg2[%c0_1, %c0_2, %c0_3, %c0_4] : memref<1x1x3x2304xf32, #tpu.memory_space<vmem>>, vector<1x1x3x2048xf32>
    %2 = vector.shape_cast %1 : vector<1x1x3x2048xf32> to vector<3x2048xf32>
    %c0_5 = arith.constant 0 : index
    %c0_6 = arith.constant 0 : index
    %c0_7 = arith.constant 0 : index
    %c1 = arith.constant 1 : index
    %3 = vector.load %arg2[%c0_5, %c0_6, %c0_7, %c1] : memref<1x1x3x2304xf32, #tpu.memory_space<vmem>>, vector<1x1x3x2048xf32>
    %4 = vector.shape_cast %3 : vector<1x1x3x2048xf32> to vector<3x2048xf32>
    %c0_8 = arith.constant 0 : index
    %c0_9 = arith.constant 0 : index
    %c0_10 = arith.constant 0 : index
    %c2 = arith.constant 2 : index
    %5 = vector.load %arg2[%c0_8, %c0_9, %c0_10, %c2] : memref<1x1x3x2304xf32, #tpu.memory_space<vmem>>, vector<1x1x3x2048xf32>
    %6 = vector.shape_cast %5 : vector<1x1x3x2048xf32> to vector<3x2048xf32>
    %c0_11 = arith.constant 0 : index
    %c0_12 = arith.constant 0 : index
    %c0_13 = arith.constant 0 : index
    %c64 = arith.constant 64 : index
    %7 = vector.load %arg2[%c0_11, %c0_12, %c0_13, %c64] : memref<1x1x3x2304xf32, #tpu.memory_space<vmem>>, vector<1x1x3x2048xf32>
    %8 = vector.shape_cast %7 : vector<1x1x3x2048xf32> to vector<3x2048xf32>
    %c0_14 = arith.constant 0 : index
    %c0_15 = arith.constant 0 : index
    %c0_16 = arith.constant 0 : index
    %c65 = arith.constant 65 : index
    %9 = vector.load %arg2[%c0_14, %c0_15, %c0_16, %c65] : memref<1x1x3x2304xf32, #tpu.memory_space<vmem>>, vector<1x1x3x2048xf32>
    %10 = vector.shape_cast %9 : vector<1x1x3x2048xf32> to vector<3x2048xf32>
    %c0_17 = arith.constant 0 : index
    %c0_18 = arith.constant 0 : index
    %c0_19 = arith.constant 0 : index
    %c66 = arith.constant 66 : index
    %11 = vector.load %arg2[%c0_17, %c0_18, %c0_19, %c66] : memref<1x1x3x2304xf32, #tpu.memory_space<vmem>>, vector<1x1x3x2048xf32>
    %12 = vector.shape_cast %11 : vector<1x1x3x2048xf32> to vector<3x2048xf32>
    %c0_20 = arith.constant 0 : index
    %c0_21 = arith.constant 0 : index
    %c0_22 = arith.constant 0 : index
    %c128 = arith.constant 128 : index
    %13 = vector.load %arg2[%c0_20, %c0_21, %c0_22, %c128] : memref<1x1x3x2304xf32, #tpu.memory_space<vmem>>, vector<1x1x3x2048xf32>
    %14 = vector.shape_cast %13 : vector<1x1x3x2048xf32> to vector<3x2048xf32>
    %c0_23 = arith.constant 0 : index
    %c0_24 = arith.constant 0 : index
    %c0_25 = arith.constant 0 : index
    %c129 = arith.constant 129 : index
    %15 = vector.load %arg2[%c0_23, %c0_24, %c0_25, %c129] : memref<1x1x3x2304xf32, #tpu.memory_space<vmem>>, vector<1x1x3x2048xf32>
    %16 = vector.shape_cast %15 : vector<1x1x3x2048xf32> to vector<3x2048xf32>
    %c0_26 = arith.constant 0 : index
    %c0_27 = arith.constant 0 : index
    %c0_28 = arith.constant 0 : index
    %c130 = arith.constant 130 : index
    %17 = vector.load %arg2[%c0_26, %c0_27, %c0_28, %c130] : memref<1x1x3x2304xf32, #tpu.memory_space<vmem>>, vector<1x1x3x2048xf32>
    %18 = vector.shape_cast %17 : vector<1x1x3x2048xf32> to vector<3x2048xf32>
    %19 = tpu.concatenate %2, %4, %6, %8, %10, %12, %14, %16, %18 in 0 : vector<3x2048xf32>, vector<3x2048xf32>, vector<3x2048xf32>, vector<3x2048xf32>, vector<3x2048xf32>, vector<3x2048xf32>, vector<3x2048xf32>, vector<3x2048xf32>, vector<3x2048xf32> -> vector<27x2048xf32>
    %cst = arith.constant dense<0.000000e+00> : vector<32x2048xf32>
    %20 = tpu.matmul %0, %19, %cst {dimension_numbers = #tpu.dot_dimension_numbers<[1], [0], [0], [1], [0, 0, 1, 1], [], []>} : vector<32x27xf32>, vector<27x2048xf32>, vector<32x2048xf32> -> vector<32x2048xf32>
    %c0_29 = arith.constant 0 : index
    %c0_30 = arith.constant 0 : index
    %21 = vector.load %arg4[%c0_29, %c0_30] : memref<32x1xf32, #tpu.memory_space<vmem>>, vector<32x1xf32>
    %22 = vector.broadcast %21 : vector<32x1xf32> to vector<32x2048xf32>
    %23 = arith.addf %20, %22 : vector<32x2048xf32>
    %c0_31 = arith.constant 0 : index
    %c0_32 = arith.constant 0 : index
    %c0_33 = arith.constant 0 : index
    %24 = vector.load %arg5[%c0_31, %c0_32, %c0_33] : memref<1x32x2048xf32, #tpu.memory_space<vmem>>, vector<1x32x2048xf32>
    %25 = vector.shape_cast %24 : vector<1x32x2048xf32> to vector<32x2048xf32>
    %26 = vector.shape_cast %23 : vector<32x2048xf32> to vector<1x32x2048xf32>
    tpu.vector_store %arg5[%c0_31, %c0_32, %c0_33], %26 {strides = array<i32>} : memref<1x32x2048xf32, #tpu.memory_space<vmem>>, vector<1x32x2048xf32>,
    return
  }
  func.func @transform_0(%arg0: i32, %arg1: i32) -> (i32, i32, i32, i32) {
    %c0_i32 = arith.constant 0 : i32
    %c0_i32_0 = arith.constant 0 : i32
    %c0_i32_1 = arith.constant 0 : i32
    return %arg0, %arg1, %c0_i32, %c0_i32_0 : i32, i32, i32, i32
  }
  func.func @transform_1(%arg0: i32, %arg1: i32) -> (i32, i32) {
    %c0_i32 = arith.constant 0 : i32
    %c0_i32_0 = arith.constant 0 : i32
    %c0_i32_1 = arith.constant 0 : i32
    return %c0_i32, %c0_i32_0 : i32, i32
  }
  func.func @transform_2(%arg0: i32, %arg1: i32) -> (i32, i32) {
    %c0_i32 = arith.constant 0 : i32
    %c0_i32_0 = arith.constant 0 : i32
    %c0_i32_1 = arith.constant 0 : i32
    return %c0_i32, %c0_i32_0 : i32, i32
  }
  func.func @transform_3(%arg0: i32, %arg1: i32) -> (i32, i32, i32) {
    %c0_i32 = arith.constant 0 : i32
    %c0_i32_0 = arith.constant 0 : i32
    return %arg0, %c0_i32, %arg1 : i32, i32, i32
  }
}

</mosaic_0001>

<llo_original>
// kernel: conv_layer.1
$region0: #{conv_layer.1}
  #allocation0 [shape = 'u32[]', space=smem, size = 0x4, offset = 0x4, fixed_abs, tag = 'smem constant byte address 0x4 - core index']
  #allocation1 [shape = 'u32[72,128]{1,0:T(1,128)}', space=vmem, size = 0x9000, scoped, tag = 'internal scratch']
  %s0 = inlined_call_operand.vmem [shape: f32[2,1,3,2304], index: 0, kind: input, shape index: {}]
  %s1 = inlined_call_operand.vmem [shape: f32[32,27], index: 1, kind: input, shape index: {}]
  %s2 = inlined_call_operand.vmem [shape: f32[32,1], index: 2, kind: input, shape index: {}]
  %s3 = inlined_call_operand.vmem [shape: f32[2,32,2048], index: 3, kind: output, shape index: {}]
  %s4 = sld [smem:[#allocation0]]
  $region45: #{conv_layer.1} parent=0
    _
  %s6 = ssub.s32 1, %s4
  %s7 = scalar_select 0, %s6, %s4
  loop: start=0, step=1, limit=4
  $region2: #{conv_layer.1} parent=0 // loop_pre_header
    _
  $region3: #{conv_layer.1} parent=0 // loop_header
    %s9 = sphi 0, %s13
    %p10 = scmp.ge.s32.totalorder %s9, 4
    %s16 = sphi 0, %s28
    %s17 = sphi 0, %s24
    %s18 = sphi 0, %s16
    %s19 = sphi 0, %s17
    %s20 = sphi 0, %s18
    %s21 = sphi 0, %s19
    %s33 = sphi 0, %s35
    %s36 = sphi 0, %s33
    %s37 = sphi 0, %s36
    %s53 = sphi 0, %s37
    %s57 = sphi 0, %s57
    %s59 = sphi 0, %s57
    %s60 = sphi 0, %s59
    %s74 = sphi 0, %s60
    %s78 = sphi 0, %s78
    %s80 = sphi 0, %s78
    %s81 = sphi 0, %s80
    %s95 = sphi 0, %s81
    %s103 = sphi 0, %s105
    %s106 = sphi 0, %s103
    %s107 = sphi 0, %s106
    %s123 = sphi 0, %s107
  $region4: #{conv_layer.1} parent=0 // loop_header_branch
    %12 = sbr.rel (%p10) target = $region8
  $region5: #{conv_layer.1} parent=0 // loop_body
    %s14 = ssub.s32 %s9, 1
    %s15 = ssub.s32 %s9, 2
    %s22 = sadd.s32 1, %s17
    %p23 = scmp.ge.s32.totalorder %s22, 1
    %s24 = scalar_select %p23, 0, %s22
    %s25 = sadd.s32 1, %s16
    %s26 = scalar_select %p23, %s25, %s16
    %p27 = scmp.ge.s32.totalorder %s26, 2
    %s28 = scalar_select %p27, 0, %s26
    %s29 = ssub.s32 %s16, %s28
    %s30 = ssub.s32 %s17, %s24
    %s31 = sor.u32 %s29, %s30
    %p32 = scmp.eq.s32.totalorder %s31, 0
    %s34 = sadd.s32 %s33, 1
    %s35 = scalar_select %p32, %s33, %s34
    %p38 = pneg %p32
    %p39 = scmp.eq.s32.totalorder %s9, 1
    %p40 = por %p38, %p39
    %p41 = scmp.ne.s32.totalorder %s33, %s36
    %p42 = scmp.eq.s32.totalorder %s9, 0
    %p43 = por %p41, %p42
    %p44 = scmp.ne.s32.totalorder %s33, %s36
    %p45 = scmp.eq.s32.totalorder %s14, 1
    %p46 = por %p44, %p45
    %p47 = scmp.ne.s32.totalorder %s36, %s37
    %p48 = scmp.eq.s32.totalorder %s14, 0
    %p49 = por %p47, %p48
    %p50 = scmp.ne.s32.totalorder %s36, %s37
    %p51 = scmp.eq.s32.totalorder %s15, 1
    %p52 = por %p50, %p51
    %p54 = scmp.ne.s32.totalorder %s37, %s53
    %p55 = scmp.eq.s32.totalorder %s15, 0
    %p56 = por %p54, %p55
    %s58 = sadd.s32 %s57, 1
    %p61 = scmp.eq.s32.totalorder %s9, 1
    %p62 = scmp.ne.s32.totalorder %s57, %s59
    %p63 = scmp.eq.s32.totalorder %s9, 0
    %p64 = por %p62, %p63
    %p65 = scmp.ne.s32.totalorder %s57, %s59
    %p66 = scmp.eq.s32.totalorder %s14, 1
    %p67 = por %p65, %p66
    %p68 = scmp.ne.s32.totalorder %s59, %s60
    %p69 = scmp.eq.s32.totalorder %s14, 0
    %p70 = por %p68, %p69
    %p71 = scmp.ne.s32.totalorder %s59, %s60
    %p72 = scmp.eq.s32.totalorder %s15, 1
    %p73 = por %p71, %p72
    %p75 = scmp.ne.s32.totalorder %s60, %s74
    %p76 = scmp.eq.s32.totalorder %s15, 0
    %p77 = por %p75, %p76
    %s79 = sadd.s32 %s78, 1
    %p82 = scmp.eq.s32.totalorder %s9, 1
    %p83 = scmp.ne.s32.totalorder %s78, %s80
    %p84 = scmp.eq.s32.totalorder %s9, 0
    %p85 = por %p83, %p84
    %p86 = scmp.ne.s32.totalorder %s78, %s80
    %p87 = scmp.eq.s32.totalorder %s14, 1
    %p88 = por %p86, %p87
    %p89 = scmp.ne.s32.totalorder %s80, %s81
    %p90 = scmp.eq.s32.totalorder %s14, 0
    %p91 = por %p89, %p90
    %p92 = scmp.ne.s32.totalorder %s80, %s81
    %p93 = scmp.eq.s32.totalorder %s15, 1
    %p94 = por %p92, %p93
    %p96 = scmp.ne.s32.totalorder %s81, %s95
    %p97 = scmp.eq.s32.totalorder %s15, 0
    %p98 = por %p96, %p97
    %s99 = ssub.s32 %s16, %s28
    %s100 = ssub.s32 %s17, %s24
    %s101 = sor.u32 %s99, %s100
    %p102 = scmp.eq.s32.totalorder %s101, 0
    %s104 = sadd.s32 %s103, 1
    %s105 = scalar_select %p102, %s103, %s104
    %p108 = pneg %p102
    %p109 = scmp.eq.s32.totalorder %s9, 1
    %p110 = por %p108, %p109
    %p111 = scmp.ne.s32.totalorder %s103, %s106
    %p112 = scmp.eq.s32.totalorder %s9, 0
    %p113 = por %p111, %p112
    %p114 = scmp.ne.s32.totalorder %s103, %s106
    %p115 = scmp.eq.s32.totalorder %s14, 1
    %p116 = por %p114, %p115
    %p117 = scmp.ne.s32.totalorder %s106, %s107
    %p118 = scmp.eq.s32.totalorder %s14, 0
    %p119 = por %p117, %p118
    %p120 = scmp.ne.s32.totalorder %s106, %s107
    %p121 = scmp.eq.s32.totalorder %s15, 1
    %p122 = por %p120, %p121
    %p124 = scmp.ne.s32.totalorder %s107, %s123
    %p125 = scmp.eq.s32.totalorder %s15, 0
    %p126 = por %p124, %p125
    %p127 = scmp.le.s32.totalorder 1, %s9
    %p128 = scmp.lt.s32.totalorder %s9, 3
    %p129 = pnand %p127, %p128
    %p130 = pneg %p129
    // Predicated region
    $region9: #{conv_layer.1} parent=5 // pred_check
      _
    $region10: #{conv_layer.1} parent=5 // pred_check_branch
      %132 = sbr.rel (%p129) target = $region12
    $region11: #{conv_layer.1} parent=5 // pred_region
      %s133 = ssub.s32 %s9, 1
      // Predicated region
      $region13: #{conv_layer.1} parent=11 // pred_check
        %p134 = pneg %p70
      $region14: #{conv_layer.1} parent=11 // pred_check_branch
        %136 = sbr.rel (%p134) target = $region16
      $region15: #{conv_layer.1} parent=11 // pred_region
        _
      $region16: #{conv_layer.1} parent=11 // pred_fallthru
        _
      // Predicated region
      $region17: #{conv_layer.1} parent=11 // pred_check
        %p137 = pneg %p91
      $region18: #{conv_layer.1} parent=11 // pred_check_branch
        %139 = sbr.rel (%p137) target = $region20
      $region19: #{conv_layer.1} parent=11 // pred_region
        _
      $region20: #{conv_layer.1} parent=11 // pred_fallthru
        _
    $region12: #{conv_layer.1} parent=5 // pred_fallthru
      _
    %p140 = scmp.lt.s32.totalorder %s9, 2
    // Predicated region
    $region21: #{conv_layer.1} parent=5 // pred_check
      %p141 = pneg %p140
    $region22: #{conv_layer.1} parent=5 // pred_check_branch
      %143 = sbr.rel (%p141) target = $region24
    $region23: #{conv_layer.1} parent=5 // pred_region
      // Predicated region
      $region25: #{conv_layer.1} parent=23 // pred_check
        %p144 = pneg %p43
      $region26: #{conv_layer.1} parent=23 // pred_check_branch
        %146 = sbr.rel (%p144) target = $region28
      $region27: #{conv_layer.1} parent=23 // pred_region
        %p147 = scmp.lt.s32.totalorder %s16, 1
        %s148 = scalar_select %p147, %s16, 1
        %p149 = scmp.lt.s32.totalorder %s17, 0
        %s150 = scalar_select %p149, %s17, 0
        %s151 = smul.addr %s150, 18
        %s152 = smul.addr %s148, 18
        %s153 = sadd.s32 %s151, %s152
        %s154 = smul.addr %s153, 4
        %s155 = scalar_lea.vmem %s0, %s154
      $region28: #{conv_layer.1} parent=23 // pred_fallthru
        _
    $region24: #{conv_layer.1} parent=5 // pred_fallthru
      _
    %p156 = scmp.le.s32.totalorder 1, %s9
    %p157 = scmp.lt.s32.totalorder %s9, 3
    %p158 = pnand %p156, %p157
    %p159 = pneg %p158
    // Predicated region
    $region29: #{conv_layer.1} parent=5 // pred_check
      _
    $region30: #{conv_layer.1} parent=5 // pred_check_branch
      %161 = sbr.rel (%p158) target = $region32
    $region31: #{conv_layer.1} parent=5 // pred_region
      %s162 = ssub.s32 %s9, 1
      %p163 = scmp.lt.s32.totalorder %s18, 1
      %s164 = scalar_select %p163, %s18, 1
      %p165 = scmp.lt.s32.totalorder %s19, 0
      %s166 = scalar_select %p165, %s19, 0
      %s167 = smul.addr %s166, 18
      %s168 = smul.addr %s164, 18
      %s169 = sadd.s32 %s167, %s168
      %s170 = smul.addr %s169, 4
      %s171 = scalar_lea.vmem %s0, %s170
      %p172 = pneg %p49
      %p173 = pneg %p46
      %p174 = pneg %p70
      %p175 = pneg %p67
      %p176 = pneg %p91
      %p177 = pneg %p88
      %p178 = pneg %p119
      %p179 = pneg %p116
      %s180 = smul.u32 16, %s19
      %p181 = scmp.lt.s32.totalorder %s18, 1
      %s182 = scalar_select %p181, %s18, 1
      %p183 = scmp.lt.s32.totalorder %s180, 15
      %s184 = scalar_select %p183, %s180, 15
      %s185 = smul.addr %s182, 64
      %s186 = sadd.s32 %s184, %s185
      %s187 = smul.addr %s186, 8
      %s188 = scalar_lea.vmem %s3, %s187
      %p189 = scmp.lt.s32.totalorder %s18, 1
      %s190 = scalar_select %p189, %s18, 1
      %p191 = scmp.lt.s32.totalorder %s19, 0
      %s192 = scalar_select %p191, %s19, 0
      %s193 = smul.addr %s192, 18
      %s194 = smul.addr %s190, 18
      %s195 = sadd.s32 %s193, %s194
      %s196 = smul.addr %s195, 4
      %s197 = scalar_lea.vmem %s0, %s196
      %s198 = smul.u32 16, %s19
      %p199 = scmp.lt.s32.totalorder %s18, 1
      %s200 = scalar_select %p199, %s18, 1
      %p201 = scmp.lt.s32.totalorder %s198, 15
      %s202 = scalar_select %p201, %s198, 15
      %s203 = smul.addr %s200, 64
      %s204 = sadd.s32 %s202, %s203
      %s205 = smul.addr %s204, 8
      %s206 = scalar_lea.vmem %s3, %s205
      %s207 = smul.u32 16, %s19
      %v208 = vld [vmem:[%s1] sm:$0xff]
      %v209 = vld [vmem:[%s1 + $0x8] sm:$0xff]
      %v210 = vld [vmem:[%s1 + $0x10] sm:$0xff]
      %v211 = vld [vmem:[%s1 + $0x18] sm:$0xff]
      %v212 = vld [vmem:[%s197] sm:$0x77]
      %v213 = vld [vmem:[%s197 + $0x8] sm:$0x77]
      %v214 = vld [vmem:[%s197 + $0x10] sm:$0x77]
      %v215 = vld [vmem:[%s197 + $0x18] sm:$0x77]
      %v216 = vld [vmem:[%s197 + $0x20] sm:$0x77]
      %v217 = vld [vmem:[%s197 + $0x28] sm:$0x77]
      %v218 = vld [vmem:[%s197 + $0x30] sm:$0x77]
      %v219 = vld [vmem:[%s197 + $0x38] sm:$0x77]
      %v220 = vld [vmem:[%s197 + $0x40] sm:$0x7]
      %v221 = vld [vmem:[%s197 + $0x4] sm:$0x77]
      %v222 = vld [vmem:[%s197 + $0xc] sm:$0x77]
      %v223 = vld [vmem:[%s197 + $0x14] sm:$0x77]
      %v224 = vld [vmem:[%s197 + $0x1c] sm:$0x77]
      %v225 = vld [vmem:[%s197 + $0x24] sm:$0x77]
      %v226 = vld [vmem:[%s197 + $0x2c] sm:$0x77]
      %v227 = vld [vmem:[%s197 + $0x34] sm:$0x77]
      %v228 = vld [vmem:[%s197 + $0x3c] sm:$0x77]
      %v229 = vld [vmem:[%s197 + $0x44] sm:$0x7]
      %238 = vst [vmem:[#allocation1] ss:$2 sm:$0xff] %v212
      %s239 = scalar_lea.vmem [#allocation1], 16
      %240 = vst [vmem:[%s239] ss:$2 sm:$0xff] %v213
      %s241 = scalar_lea.vmem [#allocation1], 32
      %242 = vst [vmem:[%s241] ss:$2 sm:$0xff] %v214
      %s243 = scalar_lea.vmem [#allocation1], 48
      %244 = vst [vmem:[%s243] ss:$2 sm:$0xff] %v215
      %v245 = vld.sshfl [vmem:[#allocation1] sm:$0xff pattern:$0x75316420]
      %v246 = vld.sshfl [vmem:[#allocation1 + $0x8] sm:$0xff pattern:$0x75316420]
      %v247 = vld.sshfl [vmem:[#allocation1 + $0x10] sm:$0xff pattern:$0x75316420]
      %v248 = vld.sshfl [vmem:[#allocation1 + $0x18] sm:$0xff pattern:$0x75316420]
      %v249 = vld.sshfl [vmem:[#allocation1 + $0x20] sm:$0xff pattern:$0x75316420]
      %v250 = vld.sshfl [vmem:[#allocation1 + $0x28] sm:$0xff pattern:$0x75316420]
      %v251 = vld.sshfl [vmem:[#allocation1 + $0x30] sm:$0xff pattern:$0x75316420]
      %v252 = vld.sshfl [vmem:[#allocation1 + $0x38] sm:$0xff pattern:$0x75316420]
      %253 = vst [vmem:[#allocation1] ss:$2 sm:$0xff] %v216
      %254 = vst [vmem:[%s239] ss:$2 sm:$0xff] %v217
      %255 = vst [vmem:[%s241] ss:$2 sm:$0xff] %v218
      %256 = vst [vmem:[%s243] ss:$2 sm:$0xff] %v219
      %v257 = vld.sshfl [vmem:[#allocation1] sm:$0xff pattern:$0x75316420]
      %v258 = vld.sshfl [vmem:[#allocation1 + $0x8] sm:$0xff pattern:$0x75316420]
      %v259 = vld.sshfl [vmem:[#allocation1 + $0x10] sm:$0xff pattern:$0x75316420]
      %v260 = vld.sshfl [vmem:[#allocation1 + $0x18] sm:$0xff pattern:$0x75316420]
      %v261 = vld.sshfl [vmem:[#allocation1 + $0x20] sm:$0xff pattern:$0x75316420]
      %v262 = vld.sshfl [vmem:[#allocation1 + $0x28] sm:$0xff pattern:$0x75316420]
      %v263 = vld.sshfl [vmem:[#allocation1 + $0x30] sm:$0xff pattern:$0x75316420]
      %v264 = vld.sshfl [vmem:[#allocation1 + $0x38] sm:$0xff pattern:$0x75316420]
      %282 = vst [vmem:[#allocation1] ss:$2 sm:$0xff] %v212
      %s283 = scalar_lea.vmem [#allocation1], 16
      %284 = vst [vmem:[%s283] ss:$2 sm:$0xff] %v213
      %s285 = scalar_lea.vmem [#allocation1], 32
      %286 = vst [vmem:[%s285] ss:$2 sm:$0xff] %v214
      %s287 = scalar_lea.vmem [#allocation1], 48
      %288 = vst [vmem:[%s287] ss:$2 sm:$0xff] %v215
      %v289 = vld.sshfl [vmem:[#allocation1] sm:$0xff pattern:$0x75316420]
      %v290 = vld.sshfl [vmem:[#allocation1 + $0x8] sm:$0xff pattern:$0x75316420]
      %v291 = vld.sshfl [vmem:[#allocation1 + $0x10] sm:$0xff pattern:$0x75316420]
      %v292 = vld.sshfl [vmem:[#allocation1 + $0x18] sm:$0xff pattern:$0x75316420]
      %v293 = vld.sshfl [vmem:[#allocation1 + $0x20] sm:$0xff pattern:$0x75316420]
      %v294 = vld.sshfl [vmem:[#allocation1 + $0x28] sm:$0xff pattern:$0x75316420]
      %v295 = vld.sshfl [vmem:[#allocation1 + $0x30] sm:$0xff pattern:$0x75316420]
      %v296 = vld.sshfl [vmem:[#allocation1 + $0x38] sm:$0xff pattern:$0x75316420]
      %297 = vst [vmem:[#allocation1] ss:$2 sm:$0xff] %v216
      %298 = vst [vmem:[%s283] ss:$2 sm:$0xff] %v217
      %299 = vst [vmem:[%s285] ss:$2 sm:$0xff] %v218
      %300 = vst [vmem:[%s287] ss:$2 sm:$0xff] %v219
      %v301 = vld.sshfl [vmem:[#allocation1] sm:$0xff pattern:$0x75316420]
      %v302 = vld.sshfl [vmem:[#allocation1 + $0x8] sm:$0xff pattern:$0x75316420]
      %v303 = vld.sshfl [vmem:[#allocation1 + $0x10] sm:$0xff pattern:$0x75316420]
      %v304 = vld.sshfl [vmem:[#allocation1 + $0x18] sm:$0xff pattern:$0x75316420]
      %v305 = vld.sshfl [vmem:[#allocation1 + $0x20] sm:$0xff pattern:$0x75316420]
      %v306 = vld.sshfl [vmem:[#allocation1 + $0x28] sm:$0xff pattern:$0x75316420]
      %v307 = vld.sshfl [vmem:[#allocation1 + $0x30] sm:$0xff pattern:$0x75316420]
      %v308 = vld.sshfl [vmem:[#allocation1 + $0x38] sm:$0xff pattern:$0x75316420]
      %309 = vst [vmem:[#allocation1] ss:$2 sm:$0xff] %v220
      %v310 = vld.sshfl [vmem:[#allocation1] sm:$0xff pattern:$0x75316420]
      %v311 = vrot.slane %v289, 5
      %v312 = vrot.slane %v290, 5
      %v313 = vrot.slane %v291, 5
      %v314 = vrot.slane %v292, 5
      %v315 = vrot.slane %v293, 5
      %v316 = vrot.slane %v294, 5
      %v317 = vrot.slane %v295, 5
      %v318 = vrot.slane %v296, 5
      %v319 = vrot.slane %v301, 5
      %v320 = vrot.slane %v302, 5
      %v321 = vrot.slane %v303, 5
      %v322 = vrot.slane %v304, 5
      %v323 = vrot.slane %v305, 5
      %v324 = vrot.slane %v306, 5
      %v325 = vrot.slane %v307, 5
      %v326 = vrot.slane %v308, 5
      %v327 = vrot.slane %v310, 5
      %328 = vrot.lane.b32.xlu0 %v311, 127
      %v329 = vpop.permute.xlu0 %328
      %330 = vrot.lane.b32.xlu0 %v312, 127
      %v331 = vpop.permute.xlu0 %330
      %332 = vrot.lane.b32.xlu0 %v313, 127
      %v333 = vpop.permute.xlu0 %332
      %334 = vrot.lane.b32.xlu0 %v314, 127
      %v335 = vpop.permute.xlu0 %334
      %336 = vrot.lane.b32.xlu0 %v315, 127
      %v337 = vpop.permute.xlu0 %336
      %338 = vrot.lane.b32.xlu0 %v316, 127
      %v339 = vpop.permute.xlu0 %338
      %340 = vrot.lane.b32.xlu0 %v317, 127
      %v341 = vpop.permute.xlu0 %340
      %342 = vrot.lane.b32.xlu0 %v318, 127
      %v343 = vpop.permute.xlu0 %342
      %344 = vrot.lane.b32.xlu0 %v319, 127
      %v345 = vpop.permute.xlu0 %344
      %346 = vrot.lane.b32.xlu0 %v320, 127
      %v347 = vpop.permute.xlu0 %346
      %348 = vrot.lane.b32.xlu0 %v321, 127
      %v349 = vpop.permute.xlu0 %348
      %350 = vrot.lane.b32.xlu0 %v322, 127
      %v351 = vpop.permute.xlu0 %350
      %352 = vrot.lane.b32.xlu0 %v323, 127
      %v353 = vpop.permute.xlu0 %352
      %354 = vrot.lane.b32.xlu0 %v324, 127
      %v355 = vpop.permute.xlu0 %354
      %356 = vrot.lane.b32.xlu0 %v325, 127
      %v357 = vpop.permute.xlu0 %356
      %358 = vrot.lane.b32.xlu0 %v326, 127
      %v359 = vpop.permute.xlu0 %358
      %360 = vrot.lane.b32.xlu0 %v327, 127
      %v361 = vpop.permute.xlu0 %360
      %vm362 = vcmask 1039360
      %v363 = vsel %vm362, %v329, %v331
      %v364 = vsel %vm362, %v331, %v333
      %v365 = vsel %vm362, %v333, %v335
      %v366 = vsel %vm362, %v335, %v337
      %v367 = vsel %vm362, %v337, %v339
      %v368 = vsel %vm362, %v339, %v341
      %v369 = vsel %vm362, %v341, %v343
      %v370 = vsel %vm362, %v343, %v345
      %v371 = vsel %vm362, %v345, %v347
      %v372 = vsel %vm362, %v347, %v349
      %v373 = vsel %vm362, %v349, %v351
      %v374 = vsel %vm362, %v351, %v353
      %v375 = vsel %vm362, %v353, %v355
      %v376 = vsel %vm362, %v355, %v357
      %v377 = vsel %vm362, %v357, %v359
      %v378 = vsel %vm362, %v359, %v361
      %395 = vst [vmem:[#allocation1] ss:$2 sm:$0xff] %v212
      %s396 = scalar_lea.vmem [#allocation1], 16
      %397 = vst [vmem:[%s396] ss:$2 sm:$0xff] %v213
      %s398 = scalar_lea.vmem [#allocation1], 32
      %399 = vst [vmem:[%s398] ss:$2 sm:$0xff] %v214
      %s400 = scalar_lea.vmem [#allocation1], 48
      %401 = vst [vmem:[%s400] ss:$2 sm:$0xff] %v215
      %v402 = vld.sshfl [vmem:[#allocation1] sm:$0xff pattern:$0x75316420]
      %v403 = vld.sshfl [vmem:[#allocation1 + $0x8] sm:$0xff pattern:$0x75316420]
      %v404 = vld.sshfl [vmem:[#allocation1 + $0x10] sm:$0xff pattern:$0x75316420]
      %v405 = vld.sshfl [vmem:[#allocation1 + $0x18] sm:$0xff pattern:$0x75316420]
      %v406 = vld.sshfl [vmem:[#allocation1 + $0x20] sm:$0xff pattern:$0x75316420]
      %v407 = vld.sshfl [vmem:[#allocation1 + $0x28] sm:$0xff pattern:$0x75316420]
      %v408 = vld.sshfl [vmem:[#allocation1 + $0x30] sm:$0xff pattern:$0x75316420]
      %v409 = vld.sshfl [vmem:[#allocation1 + $0x38] sm:$0xff pattern:$0x75316420]
      %410 = vst [vmem:[#allocation1] ss:$2 sm:$0xff] %v216
      %411 = vst [vmem:[%s396] ss:$2 sm:$0xff] %v217
      %412 = vst [vmem:[%s398] ss:$2 sm:$0xff] %v218
      %413 = vst [vmem:[%s400] ss:$2 sm:$0xff] %v219
      %v414 = vld.sshfl [vmem:[#allocation1] sm:$0xff pattern:$0x75316420]
      %v415 = vld.sshfl [vmem:[#allocation1 + $0x8] sm:$0xff pattern:$0x75316420]
      %v416 = vld.sshfl [vmem:[#allocation1 + $0x10] sm:$0xff pattern:$0x75316420]
      %v417 = vld.sshfl [vmem:[#allocation1 + $0x18] sm:$0xff pattern:$0x75316420]
      %v418 = vld.sshfl [vmem:[#allocation1 + $0x20] sm:$0xff pattern:$0x75316420]
      %v419 = vld.sshfl [vmem:[#allocation1 + $0x28] sm:$0xff pattern:$0x75316420]
      %v420 = vld.sshfl [vmem:[#allocation1 + $0x30] sm:$0xff pattern:$0x75316420]
      %v421 = vld.sshfl [vmem:[#allocation1 + $0x38] sm:$0xff pattern:$0x75316420]
      %422 = vst [vmem:[#allocation1] ss:$2 sm:$0xff] %v220
      %v423 = vld.sshfl [vmem:[#allocation1] sm:$0xff pattern:$0x75316420]
      %v424 = vrot.slane %v402, 2
      %v425 = vrot.slane %v403, 2
      %v426 = vrot.slane %v404, 2
      %v427 = vrot.slane %v405, 2
      %v428 = vrot.slane %v406, 2
      %v429 = vrot.slane %v407, 2
      %v430 = vrot.slane %v408, 2
      %v431 = vrot.slane %v409, 2
      %v432 = vrot.slane %v414, 2
      %v433 = vrot.slane %v415, 2
      %v434 = vrot.slane %v416, 2
      %v435 = vrot.slane %v417, 2
      %v436 = vrot.slane %v418, 2
      %v437 = vrot.slane %v419, 2
      %v438 = vrot.slane %v420, 2
      %v439 = vrot.slane %v421, 2
      %v440 = vrot.slane %v423, 2
      %441 = vrot.lane.b32.xlu0 %v424, 126
      %v442 = vpop.permute.xlu0 %441
      %443 = vrot.lane.b32.xlu0 %v425, 126
      %v444 = vpop.permute.xlu0 %443
      %445 = vrot.lane.b32.xlu0 %v426, 126
      %v446 = vpop.permute.xlu0 %445
      %447 = vrot.lane.b32.xlu0 %v427, 126
      %v448 = vpop.permute.xlu0 %447
      %449 = vrot.lane.b32.xlu0 %v428, 126
      %v450 = vpop.permute.xlu0 %449
      %451 = vrot.lane.b32.xlu0 %v429, 126
      %v452 = vpop.permute.xlu0 %451
      %453 = vrot.lane.b32.xlu0 %v430, 126
      %v454 = vpop.permute.xlu0 %453
      %455 = vrot.lane.b32.xlu0 %v431, 126
      %v456 = vpop.permute.xlu0 %455
      %457 = vrot.lane.b32.xlu0 %v432, 126
      %v458 = vpop.permute.xlu0 %457
      %459 = vrot.lane.b32.xlu0 %v433, 126
      %v460 = vpop.permute.xlu0 %459
      %461 = vrot.lane.b32.xlu0 %v434, 126
      %v462 = vpop.permute.xlu0 %461
      %463 = vrot.lane.b32.xlu0 %v435, 126
      %v464 = vpop.permute.xlu0 %463
      %465 = vrot.lane.b32.xlu0 %v436, 126
      %v466 = vpop.permute.xlu0 %465
      %467 = vrot.lane.b32.xlu0 %v437, 126
      %v468 = vpop.permute.xlu0 %467
      %469 = vrot.lane.b32.xlu0 %v438, 126
      %v470 = vpop.permute.xlu0 %469
      %471 = vrot.lane.b32.xlu0 %v439, 126
      %v472 = vpop.permute.xlu0 %471
      %473 = vrot.lane.b32.xlu0 %v440, 126
      %v474 = vpop.permute.xlu0 %473
      %vm475 = vcmask 1031168
      %v476 = vsel %vm475, %v442, %v444
      %v477 = vsel %vm475, %v444, %v446
      %v478 = vsel %vm475, %v446, %v448
      %v479 = vsel %vm475, %v448, %v450
      %v480 = vsel %vm475, %v450, %v452
      %v481 = vsel %vm475, %v452, %v454
      %v482 = vsel %vm475, %v454, %v456
      %v483 = vsel %vm475, %v456, %v458
      %v484 = vsel %vm475, %v458, %v460
      %v485 = vsel %vm475, %v460, %v462
      %v486 = vsel %vm475, %v462, %v464
      %v487 = vsel %vm475, %v464, %v466
      %v488 = vsel %vm475, %v466, %v468
      %v489 = vsel %vm475, %v468, %v470
      %v490 = vsel %vm475, %v470, %v472
      %v491 = vsel %vm475, %v472, %v474
      %508 = vst [vmem:[#allocation1] ss:$2 sm:$0xff] %v212
      %s509 = scalar_lea.vmem [#allocation1], 16
      %510 = vst [vmem:[%s509] ss:$2 sm:$0xff] %v213
      %s511 = scalar_lea.vmem [#allocation1], 32
      %512 = vst [vmem:[%s511] ss:$2 sm:$0xff] %v214
      %s513 = scalar_lea.vmem [#allocation1], 48
      %514 = vst [vmem:[%s513] ss:$2 sm:$0xff] %v215
      %v515 = vld.sshfl [vmem:[#allocation1] sm:$0xff pattern:$0x75316420]
      %v516 = vld.sshfl [vmem:[#allocation1 + $0x8] sm:$0xff pattern:$0x75316420]
      %v517 = vld.sshfl [vmem:[#allocation1 + $0x10] sm:$0xff pattern:$0x75316420]
      %v518 = vld.sshfl [vmem:[#allocation1 + $0x18] sm:$0xff pattern:$0x75316420]
      %v519 = vld.sshfl [vmem:[#allocation1 + $0x20] sm:$0xff pattern:$0x75316420]
      %v520 = vld.sshfl [vmem:[#allocation1 + $0x28] sm:$0xff pattern:$0x75316420]
      %v521 = vld.sshfl [vmem:[#allocation1 + $0x30] sm:$0xff pattern:$0x75316420]
      %v522 = vld.sshfl [vmem:[#allocation1 + $0x38] sm:$0xff pattern:$0x75316420]
      %523 = vst [vmem:[#allocation1] ss:$2 sm:$0xff] %v216
      %524 = vst [vmem:[%s509] ss:$2 sm:$0xff] %v217
      %525 = vst [vmem:[%s511] ss:$2 sm:$0xff] %v218
      %526 = vst [vmem:[%s513] ss:$2 sm:$0xff] %v219
      %v527 = vld.sshfl [vmem:[#allocation1] sm:$0xff pattern:$0x75316420]
      %v528 = vld.sshfl [vmem:[#allocation1 + $0x8] sm:$0xff pattern:$0x75316420]
      %v529 = vld.sshfl [vmem:[#allocation1 + $0x10] sm:$0xff pattern:$0x75316420]
      %v530 = vld.sshfl [vmem:[#allocation1 + $0x18] sm:$0xff pattern:$0x75316420]
      %v531 = vld.sshfl [vmem:[#allocation1 + $0x20] sm:$0xff pattern:$0x75316420]
      %v532 = vld.sshfl [vmem:[#allocation1 + $0x28] sm:$0xff pattern:$0x75316420]
      %v533 = vld.sshfl [vmem:[#allocation1 + $0x30] sm:$0xff pattern:$0x75316420]
      %v534 = vld.sshfl [vmem:[#allocation1 + $0x38] sm:$0xff pattern:$0x75316420]
      %535 = vst [vmem:[#allocation1] ss:$2 sm:$0xff] %v220
      %v536 = vld.sshfl [vmem:[#allocation1] sm:$0xff pattern:$0x75316420]
      %v537 = vrot.slane %v515, 7
      %v538 = vrot.slane %v516, 7
      %v539 = vrot.slane %v517, 7
      %v540 = vrot.slane %v518, 7
      %v541 = vrot.slane %v519, 7
      %v542 = vrot.slane %v520, 7
      %v543 = vrot.slane %v521, 7
      %v544 = vrot.slane %v522, 7
      %v545 = vrot.slane %v527, 7
      %v546 = vrot.slane %v528, 7
      %v547 = vrot.slane %v529, 7
      %v548 = vrot.slane %v530, 7
      %v549 = vrot.slane %v531, 7
      %v550 = vrot.slane %v532, 7
      %v551 = vrot.slane %v533, 7
      %v552 = vrot.slane %v534, 7
      %v553 = vrot.slane %v536, 7
      %554 = vrot.lane.b32.xlu0 %v537, 64
      %v555 = vpop.permute.xlu0 %554
      %556 = vrot.lane.b32.xlu0 %v538, 64
      %v557 = vpop.permute.xlu0 %556
      %558 = vrot.lane.b32.xlu0 %v539, 64
      %v559 = vpop.permute.xlu0 %558
      %560 = vrot.lane.b32.xlu0 %v540, 64
      %v561 = vpop.permute.xlu0 %560
      %562 = vrot.lane.b32.xlu0 %v541, 64
      %v563 = vpop.permute.xlu0 %562
      %564 = vrot.lane.b32.xlu0 %v542, 64
      %v565 = vpop.permute.xlu0 %564
      %566 = vrot.lane.b32.xlu0 %v543, 64
      %v567 = vpop.permute.xlu0 %566
      %568 = vrot.lane.b32.xlu0 %v544, 64
      %v569 = vpop.permute.xlu0 %568
      %570 = vrot.lane.b32.xlu0 %v545, 64
      %v571 = vpop.permute.xlu0 %570
      %572 = vrot.lane.b32.xlu0 %v546, 64
      %v573 = vpop.permute.xlu0 %572
      %574 = vrot.lane.b32.xlu0 %v547, 64
      %v575 = vpop.permute.xlu0 %574
      %576 = vrot.lane.b32.xlu0 %v548, 64
      %v577 = vpop.permute.xlu0 %576
      %578 = vrot.lane.b32.xlu0 %v549, 64
      %v579 = vpop.permute.xlu0 %578
      %580 = vrot.lane.b32.xlu0 %v550, 64
      %v581 = vpop.permute.xlu0 %580
      %582 = vrot.lane.b32.xlu0 %v551, 64
      %v583 = vpop.permute.xlu0 %582
      %584 = vrot.lane.b32.xlu0 %v552, 64
      %v585 = vpop.permute.xlu0 %584
      %586 = vrot.lane.b32.xlu0 %v553, 64
      %v587 = vpop.permute.xlu0 %586
      %vm588 = vcmask 523264
      %v589 = vsel %vm588, %v555, %v557
      %v590 = vsel %vm588, %v557, %v559
      %v591 = vsel %vm588, %v559, %v561
      %v592 = vsel %vm588, %v561, %v563
      %v593 = vsel %vm588, %v563, %v565
      %v594 = vsel %vm588, %v565, %v567
      %v595 = vsel %vm588, %v567, %v569
      %v596 = vsel %vm588, %v569, %v571
      %v597 = vsel %vm588, %v571, %v573
      %v598 = vsel %vm588, %v573, %v575
      %v599 = vsel %vm588, %v575, %v577
      %v600 = vsel %vm588, %v577, %v579
      %v601 = vsel %vm588, %v579, %v581
      %v602 = vsel %vm588, %v581, %v583
      %v603 = vsel %vm588, %v583, %v585
      %v604 = vsel %vm588, %v585, %v587
      %s621 = scalar_lea.vmem [#allocation1], 1
      %622 = vst [vmem:[%s621] ss:$2 sm:$0xff] %v212
      %s623 = scalar_lea.vmem [#allocation1], 17
      %624 = vst [vmem:[%s623] ss:$2 sm:$0xff] %v213
      %s625 = scalar_lea.vmem [#allocation1], 33
      %626 = vst [vmem:[%s625] ss:$2 sm:$0xff] %v214
      %s627 = scalar_lea.vmem [#allocation1], 49
      %628 = vst [vmem:[%s627] ss:$2 sm:$0xff] %v215
      %v629 = vld.sshfl [vmem:[#allocation1] sm:$0xff pattern:$0x75316420]
      %v630 = vld.sshfl [vmem:[#allocation1 + $0x8] sm:$0xff pattern:$0x75316420]
      %v631 = vld.sshfl [vmem:[#allocation1 + $0x10] sm:$0xff pattern:$0x75316420]
      %v632 = vld.sshfl [vmem:[#allocation1 + $0x18] sm:$0xff pattern:$0x75316420]
      %v633 = vld.sshfl [vmem:[#allocation1 + $0x20] sm:$0xff pattern:$0x75316420]
      %v634 = vld.sshfl [vmem:[#allocation1 + $0x28] sm:$0xff pattern:$0x75316420]
      %v635 = vld.sshfl [vmem:[#allocation1 + $0x30] sm:$0xff pattern:$0x75316420]
      %v636 = vld.sshfl [vmem:[#allocation1 + $0x38] sm:$0xff pattern:$0x75316420]
      %637 = vst [vmem:[%s621] ss:$2 sm:$0xff] %v216
      %638 = vst [vmem:[%s623] ss:$2 sm:$0xff] %v217
      %639 = vst [vmem:[%s625] ss:$2 sm:$0xff] %v218
      %640 = vst [vmem:[%s627] ss:$2 sm:$0xff] %v219
      %v641 = vld.sshfl [vmem:[#allocation1] sm:$0xff pattern:$0x75316420]
      %v642 = vld.sshfl [vmem:[#allocation1 + $0x8] sm:$0xff pattern:$0x75316420]
      %v643 = vld.sshfl [vmem:[#allocation1 + $0x10] sm:$0xff pattern:$0x75316420]
      %v644 = vld.sshfl [vmem:[#allocation1 + $0x18] sm:$0xff pattern:$0x75316420]
      %v645 = vld.sshfl [vmem:[#allocation1 + $0x20] sm:$0xff pattern:$0x75316420]
      %v646 = vld.sshfl [vmem:[#allocation1 + $0x28] sm:$0xff pattern:$0x75316420]
      %v647 = vld.sshfl [vmem:[#allocation1 + $0x30] sm:$0xff pattern:$0x75316420]
      %v648 = vld.sshfl [vmem:[#allocation1 + $0x38] sm:$0xff pattern:$0x75316420]
      %649 = vst [vmem:[%s621] ss:$2 sm:$0xff] %v220
      %v650 = vld.sshfl [vmem:[#allocation1] sm:$0xff pattern:$0x75316420]
      %651 = vrot.lane.b32.xlu0 %v629, 63
      %v652 = vpop.permute.xlu0 %651
      %653 = vrot.lane.b32.xlu0 %v630, 63
      %v654 = vpop.permute.xlu0 %653
      %655 = vrot.lane.b32.xlu0 %v631, 63
      %v656 = vpop.permute.xlu0 %655
      %657 = vrot.lane.b32.xlu0 %v632, 63
      %v658 = vpop.permute.xlu0 %657
      %659 = vrot.lane.b32.xlu0 %v633, 63
      %v660 = vpop.permute.xlu0 %659
      %661 = vrot.lane.b32.xlu0 %v634, 63
      %v662 = vpop.permute.xlu0 %661
      %663 = vrot.lane.b32.xlu0 %v635, 63
      %v664 = vpop.permute.xlu0 %663
      %665 = vrot.lane.b32.xlu0 %v636, 63
      %v666 = vpop.permute.xlu0 %665
      %667 = vrot.lane.b32.xlu0 %v641, 63
      %v668 = vpop.permute.xlu0 %667
      %669 = vrot.lane.b32.xlu0 %v642, 63
      %v670 = vpop.permute.xlu0 %669
      %671 = vrot.lane.b32.xlu0 %v643, 63
      %v672 = vpop.permute.xlu0 %671
      %673 = vrot.lane.b32.xlu0 %v644, 63
      %v674 = vpop.permute.xlu0 %673
      %675 = vrot.lane.b32.xlu0 %v645, 63
      %v676 = vpop.permute.xlu0 %675
      %677 = vrot.lane.b32.xlu0 %v646, 63
      %v678 = vpop.permute.xlu0 %677
      %679 = vrot.lane.b32.xlu0 %v647, 63
      %v680 = vpop.permute.xlu0 %679
      %681 = vrot.lane.b32.xlu0 %v648, 63
      %v682 = vpop.permute.xlu0 %681
      %683 = vrot.lane.b32.xlu0 %v650, 63
      %v684 = vpop.permute.xlu0 %683
      %vm685 = vcmask 515072
      %v686 = vsel %vm685, %v652, %v654
      %v687 = vsel %vm685, %v654, %v656
      %v688 = vsel %vm685, %v656, %v658
      %v689 = vsel %vm685, %v658, %v660
      %v690 = vsel %vm685, %v660, %v662
      %v691 = vsel %vm685, %v662, %v664
      %v692 = vsel %vm685, %v664, %v666
      %v693 = vsel %vm685, %v666, %v668
      %v694 = vsel %vm685, %v668, %v670
      %v695 = vsel %vm685, %v670, %v672
      %v696 = vsel %vm685, %v672, %v674
      %v697 = vsel %vm685, %v674, %v676
      %v698 = vsel %vm685, %v676, %v678
      %v699 = vsel %vm685, %v678, %v680
      %v700 = vsel %vm685, %v680, %v682
      %v701 = vsel %vm685, %v682, %v684
      %718 = vst [vmem:[#allocation1] ss:$2 sm:$0xff] %v212
      %s719 = scalar_lea.vmem [#allocation1], 16
      %720 = vst [vmem:[%s719] ss:$2 sm:$0xff] %v213
      %s721 = scalar_lea.vmem [#allocation1], 32
      %722 = vst [vmem:[%s721] ss:$2 sm:$0xff] %v214
      %s723 = scalar_lea.vmem [#allocation1], 48
      %724 = vst [vmem:[%s723] ss:$2 sm:$0xff] %v215
      %v725 = vld.sshfl [vmem:[#allocation1] sm:$0xff pattern:$0x75316420]
      %v726 = vld.sshfl [vmem:[#allocation1 + $0x8] sm:$0xff pattern:$0x75316420]
      %v727 = vld.sshfl [vmem:[#allocation1 + $0x10] sm:$0xff pattern:$0x75316420]
      %v728 = vld.sshfl [vmem:[#allocation1 + $0x18] sm:$0xff pattern:$0x75316420]
      %v729 = vld.sshfl [vmem:[#allocation1 + $0x20] sm:$0xff pattern:$0x75316420]
      %v730 = vld.sshfl [vmem:[#allocation1 + $0x28] sm:$0xff pattern:$0x75316420]
      %v731 = vld.sshfl [vmem:[#allocation1 + $0x30] sm:$0xff pattern:$0x75316420]
      %v732 = vld.sshfl [vmem:[#allocation1 + $0x38] sm:$0xff pattern:$0x75316420]
      %733 = vst [vmem:[#allocation1] ss:$2 sm:$0xff] %v216
      %734 = vst [vmem:[%s719] ss:$2 sm:$0xff] %v217
      %735 = vst [vmem:[%s721] ss:$2 sm:$0xff] %v218
      %736 = vst [vmem:[%s723] ss:$2 sm:$0xff] %v219
      %v737 = vld.sshfl [vmem:[#allocation1] sm:$0xff pattern:$0x75316420]
      %v738 = vld.sshfl [vmem:[#allocation1 + $0x8] sm:$0xff pattern:$0x75316420]
      %v739 = vld.sshfl [vmem:[#allocation1 + $0x10] sm:$0xff pattern:$0x75316420]
      %v740 = vld.sshfl [vmem:[#allocation1 + $0x18] sm:$0xff pattern:$0x75316420]
      %v741 = vld.sshfl [vmem:[#allocation1 + $0x20] sm:$0xff pattern:$0x75316420]
      %v742 = vld.sshfl [vmem:[#allocation1 + $0x28] sm:$0xff pattern:$0x75316420]
      %v743 = vld.sshfl [vmem:[#allocation1 + $0x30] sm:$0xff pattern:$0x75316420]
      %v744 = vld.sshfl [vmem:[#allocation1 + $0x38] sm:$0xff pattern:$0x75316420]
      %745 = vst [vmem:[#allocation1] ss:$2 sm:$0xff] %v220
      %v746 = vld.sshfl [vmem:[#allocation1] sm:$0xff pattern:$0x75316420]
      %v747 = vrot.slane %v725, 1
      %v748 = vrot.slane %v726, 1
      %v749 = vrot.slane %v727, 1
      %v750 = vrot.slane %v728, 1
      %v751 = vrot.slane %v729, 1
      %v752 = vrot.slane %v730, 1
      %v753 = vrot.slane %v731, 1
      %v754 = vrot.slane %v732, 1
      %v755 = vrot.slane %v737, 1
      %v756 = vrot.slane %v738, 1
      %v757 = vrot.slane %v739, 1
      %v758 = vrot.slane %v740, 1
      %v759 = vrot.slane %v741, 1
      %v760 = vrot.slane %v742, 1
      %v761 = vrot.slane %v743, 1
      %v762 = vrot.slane %v744, 1
      %v763 = vrot.slane %v746, 1
      %764 = vrot.lane.b32.xlu0 %v747, 62
      %v765 = vpop.permute.xlu0 %764
      %766 = vrot.lane.b32.xlu0 %v748, 62
      %v767 = vpop.permute.xlu0 %766
      %768 = vrot.lane.b32.xlu0 %v749, 62
      %v769 = vpop.permute.xlu0 %768
      %770 = vrot.lane.b32.xlu0 %v750, 62
      %v771 = vpop.permute.xlu0 %770
      %772 = vrot.lane.b32.xlu0 %v751, 62
      %v773 = vpop.permute.xlu0 %772
      %774 = vrot.lane.b32.xlu0 %v752, 62
      %v775 = vpop.permute.xlu0 %774
      %776 = vrot.lane.b32.xlu0 %v753, 62
      %v777 = vpop.permute.xlu0 %776
      %778 = vrot.lane.b32.xlu0 %v754, 62
      %v779 = vpop.permute.xlu0 %778
      %780 = vrot.lane.b32.xlu0 %v755, 62
      %v781 = vpop.permute.xlu0 %780
      %782 = vrot.lane.b32.xlu0 %v756, 62
      %v783 = vpop.permute.xlu0 %782
      %784 = vrot.lane.b32.xlu0 %v757, 62
      %v785 = vpop.permute.xlu0 %784
      %786 = vrot.lane.b32.xlu0 %v758, 62
      %v787 = vpop.permute.xlu0 %786
      %788 = vrot.lane.b32.xlu0 %v759, 62
      %v789 = vpop.permute.xlu0 %788
      %790 = vrot.lane.b32.xlu0 %v760, 62
      %v791 = vpop.permute.xlu0 %790
      %792 = vrot.lane.b32.xlu0 %v761, 62
      %v793 = vpop.permute.xlu0 %792
      %794 = vrot.lane.b32.xlu0 %v762, 62
      %v795 = vpop.permute.xlu0 %794
      %796 = vrot.lane.b32.xlu0 %v763, 62
      %v797 = vpop.permute.xlu0 %796
      %vm798 = vcmask 506880
      %v799 = vsel %vm798, %v765, %v767
      %v800 = vsel %vm798, %v767, %v769
      %v801 = vsel %vm798, %v769, %v771
      %v802 = vsel %vm798, %v771, %v773
      %v803 = vsel %vm798, %v773, %v775
      %v804 = vsel %vm798, %v775, %v777
      %v805 = vsel %vm798, %v777, %v779
      %v806 = vsel %vm798, %v779, %v781
      %v807 = vsel %vm798, %v781, %v783
      %v808 = vsel %vm798, %v783, %v785
      %v809 = vsel %vm798, %v785, %v787
      %v810 = vsel %vm798, %v787, %v789
      %v811 = vsel %vm798, %v789, %v791
      %v812 = vsel %vm798, %v791, %v793
      %v813 = vsel %vm798, %v793, %v795
      %v814 = vsel %vm798, %v795, %v797
      %839 = vst [vmem:[#allocation1] ss:$2 sm:$0xff] %v221
      %s840 = scalar_lea.vmem [#allocation1], 16
      %841 = vst [vmem:[%s840] ss:$2 sm:$0xff] %v222
      %s842 = scalar_lea.vmem [#allocation1], 32
      %843 = vst [vmem:[%s842] ss:$2 sm:$0xff] %v223
      %s844 = scalar_lea.vmem [#allocation1], 48
      %845 = vst [vmem:[%s844] ss:$2 sm:$0xff] %v224
      %v846 = vld.sshfl [vmem:[#allocation1] sm:$0xff pattern:$0x75316420]
      %v847 = vld.sshfl [vmem:[#allocation1 + $0x8] sm:$0xff pattern:$0x75316420]
      %v848 = vld.sshfl [vmem:[#allocation1 + $0x10] sm:$0xff pattern:$0x75316420]
      %v849 = vld.sshfl [vmem:[#allocation1 + $0x18] sm:$0xff pattern:$0x75316420]
      %v850 = vld.sshfl [vmem:[#allocation1 + $0x20] sm:$0xff pattern:$0x75316420]
      %v851 = vld.sshfl [vmem:[#allocation1 + $0x28] sm:$0xff pattern:$0x75316420]
      %v852 = vld.sshfl [vmem:[#allocation1 + $0x30] sm:$0xff pattern:$0x75316420]
      %v853 = vld.sshfl [vmem:[#allocation1 + $0x38] sm:$0xff pattern:$0x75316420]
      %854 = vst [vmem:[#allocation1] ss:$2 sm:$0xff] %v225
      %855 = vst [vmem:[%s840] ss:$2 sm:$0xff] %v226
      %856 = vst [vmem:[%s842] ss:$2 sm:$0xff] %v227
      %857 = vst [vmem:[%s844] ss:$2 sm:$0xff] %v228
      %v858 = vld.sshfl [vmem:[#allocation1] sm:$0xff pattern:$0x75316420]
      %v859 = vld.sshfl [vmem:[#allocation1 + $0x8] sm:$0xff pattern:$0x75316420]
      %v860 = vld.sshfl [vmem:[#allocation1 + $0x10] sm:$0xff pattern:$0x75316420]
      %v861 = vld.sshfl [vmem:[#allocation1 + $0x18] sm:$0xff pattern:$0x75316420]
      %v862 = vld.sshfl [vmem:[#allocation1 + $0x20] sm:$0xff pattern:$0x75316420]
      %v863 = vld.sshfl [vmem:[#allocation1 + $0x28] sm:$0xff pattern:$0x75316420]
      %v864 = vld.sshfl [vmem:[#allocation1 + $0x30] sm:$0xff pattern:$0x75316420]
      %v865 = vld.sshfl [vmem:[#allocation1 + $0x38] sm:$0xff pattern:$0x75316420]
      %v866 = vrot.slane %v846, 6
      %v867 = vrot.slane %v847, 6
      %v868 = vrot.slane %v848, 6
      %v869 = vrot.slane %v849, 6
      %v870 = vrot.slane %v850, 6
      %v871 = vrot.slane %v851, 6
      %v872 = vrot.slane %v852, 6
      %v873 = vrot.slane %v853, 6
      %v874 = vrot.slane %v858, 6
      %v875 = vrot.slane %v859, 6
      %v876 = vrot.slane %v860, 6
      %v877 = vrot.slane %v861, 6
      %v878 = vrot.slane %v862, 6
      %v879 = vrot.slane %v863, 6
      %v880 = vrot.slane %v864, 6
      %v881 = vrot.slane %v865, 6
      %899 = vst [vmem:[#allocation1] ss:$2 sm:$0xff] %v221
      %s900 = scalar_lea.vmem [#allocation1], 16
      %901 = vst [vmem:[%s900] ss:$2 sm:$0xff] %v222
      %s902 = scalar_lea.vmem [#allocation1], 32
      %903 = vst [vmem:[%s902] ss:$2 sm:$0xff] %v223
      %s904 = scalar_lea.vmem [#allocation1], 48
      %905 = vst [vmem:[%s904] ss:$2 sm:$0xff] %v224
      %v906 = vld.sshfl [vmem:[#allocation1] sm:$0xff pattern:$0x75316420]
      %v907 = vld.sshfl [vmem:[#allocation1 + $0x8] sm:$0xff pattern:$0x75316420]
      %v908 = vld.sshfl [vmem:[#allocation1 + $0x10] sm:$0xff pattern:$0x75316420]
      %v909 = vld.sshfl [vmem:[#allocation1 + $0x18] sm:$0xff pattern:$0x75316420]
      %v910 = vld.sshfl [vmem:[#allocation1 + $0x20] sm:$0xff pattern:$0x75316420]
      %v911 = vld.sshfl [vmem:[#allocation1 + $0x28] sm:$0xff pattern:$0x75316420]
      %v912 = vld.sshfl [vmem:[#allocation1 + $0x30] sm:$0xff pattern:$0x75316420]
      %v913 = vld.sshfl [vmem:[#allocation1 + $0x38] sm:$0xff pattern:$0x75316420]
      %914 = vst [vmem:[#allocation1] ss:$2 sm:$0xff] %v225
      %915 = vst [vmem:[%s900] ss:$2 sm:$0xff] %v226
      %916 = vst [vmem:[%s902] ss:$2 sm:$0xff] %v227
      %917 = vst [vmem:[%s904] ss:$2 sm:$0xff] %v228
      %v918 = vld.sshfl [vmem:[#allocation1] sm:$0xff pattern:$0x75316420]
      %v919 = vld.sshfl [vmem:[#allocation1 + $0x8] sm:$0xff pattern:$0x75316420]
      %v920 = vld.sshfl [vmem:[#allocation1 + $0x10] sm:$0xff pattern:$0x75316420]
      %v921 = vld.sshfl [vmem:[#allocation1 + $0x18] sm:$0xff pattern:$0x75316420]
      %v922 = vld.sshfl [vmem:[#allocation1 + $0x20] sm:$0xff pattern:$0x75316420]
      %v923 = vld.sshfl [vmem:[#allocation1 + $0x28] sm:$0xff pattern:$0x75316420]
      %v924 = vld.sshfl [vmem:[#allocation1 + $0x30] sm:$0xff pattern:$0x75316420]
      %v925 = vld.sshfl [vmem:[#allocation1 + $0x38] sm:$0xff pattern:$0x75316420]
      %926 = vst [vmem:[#allocation1] ss:$2 sm:$0xff] %v229
      %v927 = vld.sshfl [vmem:[#allocation1] sm:$0xff pattern:$0x75316420]
      %v928 = vrot.slane %v906, 3
      %v929 = vrot.slane %v907, 3
      %v930 = vrot.slane %v908, 3
      %v931 = vrot.slane %v909, 3
      %v932 = vrot.slane %v910, 3
      %v933 = vrot.slane %v911, 3
      %v934 = vrot.slane %v912, 3
      %v935 = vrot.slane %v913, 3
      %v936 = vrot.slane %v918, 3
      %v937 = vrot.slane %v919, 3
      %v938 = vrot.slane %v920, 3
      %v939 = vrot.slane %v921, 3
      %v940 = vrot.slane %v922, 3
      %v941 = vrot.slane %v923, 3
      %v942 = vrot.slane %v924, 3
      %v943 = vrot.slane %v925, 3
      %v944 = vrot.slane %v927, 3
      %945 = vrot.lane.b32.xlu0 %v928, 127
      %v946 = vpop.permute.xlu0 %945
      %947 = vrot.lane.b32.xlu0 %v929, 127
      %v948 = vpop.permute.xlu0 %947
      %949 = vrot.lane.b32.xlu0 %v930, 127
      %v950 = vpop.permute.xlu0 %949
      %951 = vrot.lane.b32.xlu0 %v931, 127
      %v952 = vpop.permute.xlu0 %951
      %953 = vrot.lane.b32.xlu0 %v932, 127
      %v954 = vpop.permute.xlu0 %953
      %955 = vrot.lane.b32.xlu0 %v933, 127
      %v956 = vpop.permute.xlu0 %955
      %957 = vrot.lane.b32.xlu0 %v934, 127
      %v958 = vpop.permute.xlu0 %957
      %959 = vrot.lane.b32.xlu0 %v935, 127
      %v960 = vpop.permute.xlu0 %959
      %961 = vrot.lane.b32.xlu0 %v936, 127
      %v962 = vpop.permute.xlu0 %961
      %963 = vrot.lane.b32.xlu0 %v937, 127
      %v964 = vpop.permute.xlu0 %963
      %965 = vrot.lane.b32.xlu0 %v938, 127
      %v966 = vpop.permute.xlu0 %965
      %967 = vrot.lane.b32.xlu0 %v939, 127
      %v968 = vpop.permute.xlu0 %967
      %969 = vrot.lane.b32.xlu0 %v940, 127
      %v970 = vpop.permute.xlu0 %969
      %971 = vrot.lane.b32.xlu0 %v941, 127
      %v972 = vpop.permute.xlu0 %971
      %973 = vrot.lane.b32.xlu0 %v942, 127
      %v974 = vpop.permute.xlu0 %973
      %975 = vrot.lane.b32.xlu0 %v943, 127
      %v976 = vpop.permute.xlu0 %975
      %977 = vrot.lane.b32.xlu0 %v944, 127
      %v978 = vpop.permute.xlu0 %977
      %v979 = vsel %vm362, %v946, %v948
      %v980 = vsel %vm362, %v948, %v950
      %v981 = vsel %vm362, %v950, %v952
      %v982 = vsel %vm362, %v952, %v954
      %v983 = vsel %vm362, %v954, %v956
      %v984 = vsel %vm362, %v956, %v958
      %v985 = vsel %vm362, %v958, %v960
      %v986 = vsel %vm362, %v960, %v962
      %v987 = vsel %vm362, %v962, %v964
      %v988 = vsel %vm362, %v964, %v966
      %v989 = vsel %vm362, %v966, %v968
      %v990 = vsel %vm362, %v968, %v970
      %v991 = vsel %vm362, %v970, %v972
      %v992 = vsel %vm362, %v972, %v974
      %v993 = vsel %vm362, %v974, %v976
      %v994 = vsel %vm362, %v976, %v978
      %1011 = vst [vmem:[#allocation1] ss:$2 sm:$0xff] %v221
      %s1012 = scalar_lea.vmem [#allocation1], 16
      %1013 = vst [vmem:[%s1012] ss:$2 sm:$0xff] %v222
      %s1014 = scalar_lea.vmem [#allocation1], 32
      %1015 = vst [vmem:[%s1014] ss:$2 sm:$0xff] %v223
      %s1016 = scalar_lea.vmem [#allocation1], 48
      %1017 = vst [vmem:[%s1016] ss:$2 sm:$0xff] %v224
      %v1018 = vld.sshfl [vmem:[#allocation1] sm:$0xff pattern:$0x75316420]
      %v1019 = vld.sshfl [vmem:[#allocation1 + $0x8] sm:$0xff pattern:$0x75316420]
      %v1020 = vld.sshfl [vmem:[#allocation1 + $0x10] sm:$0xff pattern:$0x75316420]
      %v1021 = vld.sshfl [vmem:[#allocation1 + $0x18] sm:$0xff pattern:$0x75316420]
      %v1022 = vld.sshfl [vmem:[#allocation1 + $0x20] sm:$0xff pattern:$0x75316420]
      %v1023 = vld.sshfl [vmem:[#allocation1 + $0x28] sm:$0xff pattern:$0x75316420]
      %v1024 = vld.sshfl [vmem:[#allocation1 + $0x30] sm:$0xff pattern:$0x75316420]
      %v1025 = vld.sshfl [vmem:[#allocation1 + $0x38] sm:$0xff pattern:$0x75316420]
      %1026 = vst [vmem:[#allocation1] ss:$2 sm:$0xff] %v225
      %1027 = vst [vmem:[%s1012] ss:$2 sm:$0xff] %v226
      %1028 = vst [vmem:[%s1014] ss:$2 sm:$0xff] %v227
      %1029 = vst [vmem:[%s1016] ss:$2 sm:$0xff] %v228
      %v1030 = vld.sshfl [vmem:[#allocation1] sm:$0xff pattern:$0x75316420]
      %v1031 = vld.sshfl [vmem:[#allocation1 + $0x8] sm:$0xff pattern:$0x75316420]
      %v1032 = vld.sshfl [vmem:[#allocation1 + $0x10] sm:$0xff pattern:$0x75316420]
      %v1033 = vld.sshfl [vmem:[#allocation1 + $0x18] sm:$0xff pattern:$0x75316420]
      %v1034 = vld.sshfl [vmem:[#allocation1 + $0x20] sm:$0xff pattern:$0x75316420]
      %v1035 = vld.sshfl [vmem:[#allocation1 + $0x28] sm:$0xff pattern:$0x75316420]
      %v1036 = vld.sshfl [vmem:[#allocation1 + $0x30] sm:$0xff pattern:$0x75316420]
      %v1037 = vld.sshfl [vmem:[#allocation1 + $0x38] sm:$0xff pattern:$0x75316420]
      %1038 = vst [vmem:[#allocation1] ss:$2 sm:$0xff] %v229
      %v1039 = vld.sshfl [vmem:[#allocation1] sm:$0xff pattern:$0x75316420]
      %1040 = vrot.lane.b32.xlu0 %v1018, 126
      %v1041 = vpop.permute.xlu0 %1040
      %1042 = vrot.lane.b32.xlu0 %v1019, 126
      %v1043 = vpop.permute.xlu0 %1042
      %1044 = vrot.lane.b32.xlu0 %v1020, 126
      %v1045 = vpop.permute.xlu0 %1044
      %1046 = vrot.lane.b32.xlu0 %v1021, 126
      %v1047 = vpop.permute.xlu0 %1046
      %1048 = vrot.lane.b32.xlu0 %v1022, 126
      %v1049 = vpop.permute.xlu0 %1048
      %1050 = vrot.lane.b32.xlu0 %v1023, 126
      %v1051 = vpop.permute.xlu0 %1050
      %1052 = vrot.lane.b32.xlu0 %v1024, 126
      %v1053 = vpop.permute.xlu0 %1052
      %1054 = vrot.lane.b32.xlu0 %v1025, 126
      %v1055 = vpop.permute.xlu0 %1054
      %1056 = vrot.lane.b32.xlu0 %v1030, 126
      %v1057 = vpop.permute.xlu0 %1056
      %1058 = vrot.lane.b32.xlu0 %v1031, 126
      %v1059 = vpop.permute.xlu0 %1058
      %1060 = vrot.lane.b32.xlu0 %v1032, 126
      %v1061 = vpop.permute.xlu0 %1060
      %1062 = vrot.lane.b32.xlu0 %v1033, 126
      %v1063 = vpop.permute.xlu0 %1062
      %1064 = vrot.lane.b32.xlu0 %v1034, 126
      %v1065 = vpop.permute.xlu0 %1064
      %1066 = vrot.lane.b32.xlu0 %v1035, 126
      %v1067 = vpop.permute.xlu0 %1066
      %1068 = vrot.lane.b32.xlu0 %v1036, 126
      %v1069 = vpop.permute.xlu0 %1068
      %1070 = vrot.lane.b32.xlu0 %v1037, 126
      %v1071 = vpop.permute.xlu0 %1070
      %1072 = vrot.lane.b32.xlu0 %v1039, 126
      %v1073 = vpop.permute.xlu0 %1072
      %v1074 = vsel %vm475, %v1041, %v1043
      %v1075 = vsel %vm475, %v1043, %v1045
      %v1076 = vsel %vm475, %v1045, %v1047
      %v1077 = vsel %vm475, %v1047, %v1049
      %v1078 = vsel %vm475, %v1049, %v1051
      %v1079 = vsel %vm475, %v1051, %v1053
      %v1080 = vsel %vm475, %v1053, %v1055
      %v1081 = vsel %vm475, %v1055, %v1057
      %v1082 = vsel %vm475, %v1057, %v1059
      %v1083 = vsel %vm475, %v1059, %v1061
      %v1084 = vsel %vm475, %v1061, %v1063
      %v1085 = vsel %vm475, %v1063, %v1065
      %v1086 = vsel %vm475, %v1065, %v1067
      %v1087 = vsel %vm475, %v1067, %v1069
      %v1088 = vsel %vm475, %v1069, %v1071
      %v1089 = vsel %vm475, %v1071, %v1073
      %vm1090 = vcmask 1042432
      %v1091 = vsel %vm1090, %v245, %v363
      %v1092 = vsel %vm1090, %v246, %v364
      %v1093 = vsel %vm1090, %v247, %v365
      %v1094 = vsel %vm1090, %v248, %v366
      %v1095 = vsel %vm1090, %v249, %v367
      %v1096 = vsel %vm1090, %v250, %v368
      %v1097 = vsel %vm1090, %v251, %v369
      %v1098 = vsel %vm1090, %v252, %v370
      %v1099 = vsel %vm1090, %v257, %v371
      %v1100 = vsel %vm1090, %v258, %v372
      %v1101 = vsel %vm1090, %v259, %v373
      %v1102 = vsel %vm1090, %v260, %v374
      %v1103 = vsel %vm1090, %v261, %v375
      %v1104 = vsel %vm1090, %v262, %v376
      %v1105 = vsel %vm1090, %v263, %v377
      %v1106 = vsel %vm1090, %v264, %v378
      %vm1107 = vcmask 1045504
      %v1108 = vsel %vm1107, %v1091, %v476
      %v1109 = vsel %vm1107, %v1092, %v477
      %v1110 = vsel %vm1107, %v1093, %v478
      %v1111 = vsel %vm1107, %v1094, %v479
      %v1112 = vsel %vm1107, %v1095, %v480
      %v1113 = vsel %vm1107, %v1096, %v481
      %v1114 = vsel %vm1107, %v1097, %v482
      %v1115 = vsel %vm1107, %v1098, %v483
      %v1116 = vsel %vm1107, %v1099, %v484
      %v1117 = vsel %vm1107, %v1100, %v485
      %v1118 = vsel %vm1107, %v1101, %v486
      %v1119 = vsel %vm1107, %v1102, %v487
      %v1120 = vsel %vm1107, %v1103, %v488
      %v1121 = vsel %vm1107, %v1104, %v489
      %v1122 = vsel %vm1107, %v1105, %v490
      %v1123 = vsel %vm1107, %v1106, %v491
      %vm1124 = vcmask 1040384
      %v1125 = vsel %vm1124, %v476, %v589
      %v1126 = vsel %vm1124, %v477, %v590
      %v1127 = vsel %vm1124, %v478, %v591
      %v1128 = vsel %vm1124, %v479, %v592
      %v1129 = vsel %vm1124, %v480, %v593
      %v1130 = vsel %vm1124, %v481, %v594
      %v1131 = vsel %vm1124, %v482, %v595
      %v1132 = vsel %vm1124, %v483, %v596
      %v1133 = vsel %vm1124, %v484, %v597
      %v1134 = vsel %vm1124, %v485, %v598
      %v1135 = vsel %vm1124, %v486, %v599
      %v1136 = vsel %vm1124, %v487, %v600
      %v1137 = vsel %vm1124, %v488, %v601
      %v1138 = vsel %vm1124, %v489, %v602
      %v1139 = vsel %vm1124, %v490, %v603
      %v1140 = vsel %vm1124, %v491, %v604
      %vm1141 = vcmask 1043456
      %v1142 = vsel %vm1141, %v1125, %v686
      %v1143 = vsel %vm1141, %v1126, %v687
      %v1144 = vsel %vm1141, %v1127, %v688
      %v1145 = vsel %vm1141, %v1128, %v689
      %v1146 = vsel %vm1141, %v1129, %v690
      %v1147 = vsel %vm1141, %v1130, %v691
      %v1148 = vsel %vm1141, %v1131, %v692
      %v1149 = vsel %vm1141, %v1132, %v693
      %v1150 = vsel %vm1141, %v1133, %v694
      %v1151 = vsel %vm1141, %v1134, %v695
      %v1152 = vsel %vm1141, %v1135, %v696
      %v1153 = vsel %vm1141, %v1136, %v697
      %v1154 = vsel %vm1141, %v1137, %v698
      %v1155 = vsel %vm1141, %v1138, %v699
      %v1156 = vsel %vm1141, %v1139, %v700
      %v1157 = vsel %vm1141, %v1140, %v701
      %vm1158 = vcmask 1046528
      %v1159 = vsel %vm1158, %v1142, %v799
      %v1160 = vsel %vm1158, %v1143, %v800
      %v1161 = vsel %vm1158, %v1144, %v801
      %v1162 = vsel %vm1158, %v1145, %v802
      %v1163 = vsel %vm1158, %v1146, %v803
      %v1164 = vsel %vm1158, %v1147, %v804
      %v1165 = vsel %vm1158, %v1148, %v805
      %v1166 = vsel %vm1158, %v1149, %v806
      %v1167 = vsel %vm1158, %v1150, %v807
      %v1168 = vsel %vm1158, %v1151, %v808
      %v1169 = vsel %vm1158, %v1152, %v809
      %v1170 = vsel %vm1158, %v1153, %v810
      %v1171 = vsel %vm1158, %v1154, %v811
      %v1172 = vsel %vm1158, %v1155, %v812
      %v1173 = vsel %vm1158, %v1156, %v813
      %v1174 = vsel %vm1158, %v1157, %v814
      %vm1175 = vcmask 1041408
      %v1176 = vsel %vm1175, %v799, %v866
      %v1177 = vsel %vm1175, %v800, %v867
      %v1178 = vsel %vm1175, %v801, %v868
      %v1179 = vsel %vm1175, %v802, %v869
      %v1180 = vsel %vm1175, %v803, %v870
      %v1181 = vsel %vm1175, %v804, %v871
      %v1182 = vsel %vm1175, %v805, %v872
      %v1183 = vsel %vm1175, %v806, %v873
      %v1184 = vsel %vm1175, %v807, %v874
      %v1185 = vsel %vm1175, %v808, %v875
      %v1186 = vsel %vm1175, %v809, %v876
      %v1187 = vsel %vm1175, %v810, %v877
      %v1188 = vsel %vm1175, %v811, %v878
      %v1189 = vsel %vm1175, %v812, %v879
      %v1190 = vsel %vm1175, %v813, %v880
      %v1191 = vsel %vm1175, %v814, %v881
      %vm1192 = vcmask 1044480
      %v1193 = vsel %vm1192, %v1176, %v979
      %v1194 = vsel %vm1192, %v1177, %v980
      %v1195 = vsel %vm1192, %v1178, %v981
      %v1196 = vsel %vm1192, %v1179, %v982
      %v1197 = vsel %vm1192, %v1180, %v983
      %v1198 = vsel %vm1192, %v1181, %v984
      %v1199 = vsel %vm1192, %v1182, %v985
      %v1200 = vsel %vm1192, %v1183, %v986
      %v1201 = vsel %vm1192, %v1184, %v987
      %v1202 = vsel %vm1192, %v1185, %v988
      %v1203 = vsel %vm1192, %v1186, %v989
      %v1204 = vsel %vm1192, %v1187, %v990
      %v1205 = vsel %vm1192, %v1188, %v991
      %v1206 = vsel %vm1192, %v1189, %v992
      %v1207 = vsel %vm1192, %v1190, %v993
      %v1208 = vsel %vm1192, %v1191, %v994
      %v1209 = vld [vmem:[%s2] sm:$0xff]
      %v1210 = vld [vmem:[%s2 + $0x8] sm:$0xff]
      %v1211 = vld [vmem:[%s2 + $0x10] sm:$0xff]
      %v1212 = vld [vmem:[%s2 + $0x18] sm:$0xff]
      %1214 = vset.pattern.permute.xlu0 0
      %1215 = vperm.xlu0 %1214, %v1209
      %v1216 = vpop.permute.xlu0 %1215
      %1219 = vset.pattern.permute.xlu0 0
      %1220 = vperm.xlu0 %1219, %v1210
      %v1221 = vpop.permute.xlu0 %1220
      %1224 = vset.pattern.permute.xlu0 0
      %1225 = vperm.xlu0 %1224, %v1211
      %v1226 = vpop.permute.xlu0 %1225
      %1229 = vset.pattern.permute.xlu0 0
      %1230 = vperm.xlu0 %1229, %v1212
      %v1231 = vpop.permute.xlu0 %1230
      %vm1233 = vcmask 220160
      %v1235 = vsel %vm1233, %v208, 0
      %v1238 = vsel %vm1233, %v209, 0
      %v1241 = vsel %vm1233, %v210, 0
      %v1244 = vsel %vm1233, %v211, 0
      %v1246 = vsel %vm1090, %v1074, 0
      %v1248 = vsel %vm1090, %v1075, 0
      %v1250 = vsel %vm1090, %v1076, 0
      %v1252 = vsel %vm1090, %v1077, 0
      %v1254 = vsel %vm1090, %v1078, 0
      %v1256 = vsel %vm1090, %v1079, 0
      %v1258 = vsel %vm1090, %v1080, 0
      %v1260 = vsel %vm1090, %v1081, 0
      %v1262 = vsel %vm1090, %v1082, 0
      %v1264 = vsel %vm1090, %v1083, 0
      %v1266 = vsel %vm1090, %v1084, 0
      %v1268 = vsel %vm1090, %v1085, 0
      %v1270 = vsel %vm1090, %v1086, 0
      %v1272 = vsel %vm1090, %v1087, 0
      %v1274 = vsel %vm1090, %v1088, 0
      %v1276 = vsel %vm1090, %v1089, 0
      %1278 = vmatpush.msra.mxu0 0.0
      %1279 = vmatpush.msra.mxu0 0.0
      %1280 = vmatpush.msra.mxu0 0.0
      %1281 = vmatpush.msra.mxu0 0.0
      %1282 = vmatpush.msra.mxu0 0.0
      %1283 = vmatpush.msra.mxu0 0.0
      %1284 = vmatpush.msra.mxu0 0.0
      %1285 = vmatpush.msra.mxu0 0.0
      %1286 = vmatpush.msra.mxu0 0.0
      %1287 = vmatpush.msra.mxu0 0.0
      %1288 = vmatpush.msra.mxu0 0.0
      %1289 = vmatpush.msra.mxu0 0.0
      %1290 = vmatpush.msra.mxu0 %v1246
      %1291 = vmatpush.msra.mxu0 %v1193
      %1292 = vmatpush.msra.mxu0 %v1159
      %1293 = vmatpush.msra.mxu0 %v1108
      %1294 = vmatmul.f32.gmra.mxu0 %v1235
      %v1295 = vpop.f32.mrf.mxu0
      %v1296 = vadd.f32 %v1216, %v1295
      %1297 = vmatmul.f32.gmra.mxu0 %v1238
      %v1298 = vpop.f32.mrf.mxu0
      %v1299 = vadd.f32 %v1221, %v1298
      %1300 = vmatmul.f32.gmra.mxu0 %v1241
      %v1301 = vpop.f32.mrf.mxu0
      %v1302 = vadd.f32 %v1226, %v1301
      %1303 = vmatmul.f32.gmra.mxu0 %v1244
      %v1304 = vpop.f32.mrf.mxu0
      %v1305 = vadd.f32 %v1231, %v1304
      %1306 = vdwg.mxu0
      %1307 = vmatpush.msra.mxu0 0.0
      %1308 = vmatpush.msra.mxu0 0.0
      %1309 = vmatpush.msra.mxu0 0.0
      %1310 = vmatpush.msra.mxu0 0.0
      %1311 = vmatpush.msra.mxu0 0.0
      %1312 = vmatpush.msra.mxu0 0.0
      %1313 = vmatpush.msra.mxu0 0.0
      %1314 = vmatpush.msra.mxu0 0.0
      %1315 = vmatpush.msra.mxu0 0.0
      %1316 = vmatpush.msra.mxu0 0.0
      %1317 = vmatpush.msra.mxu0 0.0
      %1318 = vmatpush.msra.mxu0 0.0
      %1319 = vmatpush.msra.mxu0 %v1248
      %1320 = vmatpush.msra.mxu0 %v1194
      %1321 = vmatpush.msra.mxu0 %v1160
      %1322 = vmatpush.msra.mxu0 %v1109
      %1323 = vmatmul.f32.gmra.mxu0 %v1235
      %v1324 = vpop.f32.mrf.mxu0
      %v1325 = vadd.f32 %v1216, %v1324
      %1326 = vmatmul.f32.gmra.mxu0 %v1238
      %v1327 = vpop.f32.mrf.mxu0
      %v1328 = vadd.f32 %v1221, %v1327
      %1329 = vmatmul.f32.gmra.mxu0 %v1241
      %v1330 = vpop.f32.mrf.mxu0
      %v1331 = vadd.f32 %v1226, %v1330
      %1332 = vmatmul.f32.gmra.mxu0 %v1244
      %v1333 = vpop.f32.mrf.mxu0
      %v1334 = vadd.f32 %v1231, %v1333
      %1335 = vdwg.mxu0
      %1336 = vmatpush.msra.mxu0 0.0
      %1337 = vmatpush.msra.mxu0 0.0
      %1338 = vmatpush.msra.mxu0 0.0
      %1339 = vmatpush.msra.mxu0 0.0
      %1340 = vmatpush.msra.mxu0 0.0
      %1341 = vmatpush.msra.mxu0 0.0
      %1342 = vmatpush.msra.mxu0 0.0
      %1343 = vmatpush.msra.mxu0 0.0
      %1344 = vmatpush.msra.mxu0 0.0
      %1345 = vmatpush.msra.mxu0 0.0
      %1346 = vmatpush.msra.mxu0 0.0
      %1347 = vmatpush.msra.mxu0 0.0
      %1348 = vmatpush.msra.mxu0 %v1250
      %1349 = vmatpush.msra.mxu0 %v1195
      %1350 = vmatpush.msra.mxu0 %v1161
      %1351 = vmatpush.msra.mxu0 %v1110
      %1352 = vmatmul.f32.gmra.mxu0 %v1235
      %v1353 = vpop.f32.mrf.mxu0
      %v1354 = vadd.f32 %v1216, %v1353
      %1355 = vmatmul.f32.gmra.mxu0 %v1238
      %v1356 = vpop.f32.mrf.mxu0
      %v1357 = vadd.f32 %v1221, %v1356
      %1358 = vmatmul.f32.gmra.mxu0 %v1241
      %v1359 = vpop.f32.mrf.mxu0
      %v1360 = vadd.f32 %v1226, %v1359
      %1361 = vmatmul.f32.gmra.mxu0 %v1244
      %v1362 = vpop.f32.mrf.mxu0
      %v1363 = vadd.f32 %v1231, %v1362
      %1364 = vdwg.mxu0
      %1365 = vmatpush.msra.mxu0 0.0
      %1366 = vmatpush.msra.mxu0 0.0
      %1367 = vmatpush.msra.mxu0 0.0
      %1368 = vmatpush.msra.mxu0 0.0
      %1369 = vmatpush.msra.mxu0 0.0
      %1370 = vmatpush.msra.mxu0 0.0
      %1371 = vmatpush.msra.mxu0 0.0
      %1372 = vmatpush.msra.mxu0 0.0
      %1373 = vmatpush.msra.mxu0 0.0
      %1374 = vmatpush.msra.mxu0 0.0
      %1375 = vmatpush.msra.mxu0 0.0
      %1376 = vmatpush.msra.mxu0 0.0
      %1377 = vmatpush.msra.mxu0 %v1252
      %1378 = vmatpush.msra.mxu0 %v1196
      %1379 = vmatpush.msra.mxu0 %v1162
      %1380 = vmatpush.msra.mxu0 %v1111
      %1381 = vmatmul.f32.gmra.mxu0 %v1235
      %v1382 = vpop.f32.mrf.mxu0
      %v1383 = vadd.f32 %v1216, %v1382
      %1384 = vmatmul.f32.gmra.mxu0 %v1238
      %v1385 = vpop.f32.mrf.mxu0
      %v1386 = vadd.f32 %v1221, %v1385
      %1387 = vmatmul.f32.gmra.mxu0 %v1241
      %v1388 = vpop.f32.mrf.mxu0
      %v1389 = vadd.f32 %v1226, %v1388
      %1390 = vmatmul.f32.gmra.mxu0 %v1244
      %v1391 = vpop.f32.mrf.mxu0
      %v1392 = vadd.f32 %v1231, %v1391
      %1393 = vdwg.mxu0
      %1394 = vmatpush.msra.mxu0 0.0
      %1395 = vmatpush.msra.mxu0 0.0
      %1396 = vmatpush.msra.mxu0 0.0
      %1397 = vmatpush.msra.mxu0 0.0
      %1398 = vmatpush.msra.mxu0 0.0
      %1399 = vmatpush.msra.mxu0 0.0
      %1400 = vmatpush.msra.mxu0 0.0
      %1401 = vmatpush.msra.mxu0 0.0
      %1402 = vmatpush.msra.mxu0 0.0
      %1403 = vmatpush.msra.mxu0 0.0
      %1404 = vmatpush.msra.mxu0 0.0
      %1405 = vmatpush.msra.mxu0 0.0
      %1406 = vmatpush.msra.mxu0 %v1254
      %1407 = vmatpush.msra.mxu0 %v1197
      %1408 = vmatpush.msra.mxu0 %v1163
      %1409 = vmatpush.msra.mxu0 %v1112
      %1410 = vmatmul.f32.gmra.mxu0 %v1235
      %v1411 = vpop.f32.mrf.mxu0
      %v1412 = vadd.f32 %v1216, %v1411
      %1413 = vmatmul.f32.gmra.mxu0 %v1238
      %v1414 = vpop.f32.mrf.mxu0
      %v1415 = vadd.f32 %v1221, %v1414
      %1416 = vmatmul.f32.gmra.mxu0 %v1241
      %v1417 = vpop.f32.mrf.mxu0
      %v1418 = vadd.f32 %v1226, %v1417
      %1419 = vmatmul.f32.gmra.mxu0 %v1244
      %v1420 = vpop.f32.mrf.mxu0
      %v1421 = vadd.f32 %v1231, %v1420
      %1422 = vdwg.mxu0
      %1423 = vmatpush.msra.mxu0 0.0
      %1424 = vmatpush.msra.mxu0 0.0
      %1425 = vmatpush.msra.mxu0 0.0
      %1426 = vmatpush.msra.mxu0 0.0
      %1427 = vmatpush.msra.mxu0 0.0
      %1428 = vmatpush.msra.mxu0 0.0
      %1429 = vmatpush.msra.mxu0 0.0
      %1430 = vmatpush.msra.mxu0 0.0
      %1431 = vmatpush.msra.mxu0 0.0
      %1432 = vmatpush.msra.mxu0 0.0
      %1433 = vmatpush.msra.mxu0 0.0
      %1434 = vmatpush.msra.mxu0 0.0
      %1435 = vmatpush.msra.mxu0 %v1256
      %1436 = vmatpush.msra.mxu0 %v1198
      %1437 = vmatpush.msra.mxu0 %v1164
      %1438 = vmatpush.msra.mxu0 %v1113
      %1439 = vmatmul.f32.gmra.mxu0 %v1235
      %v1440 = vpop.f32.mrf.mxu0
      %v1441 = vadd.f32 %v1216, %v1440
      %1442 = vmatmul.f32.gmra.mxu0 %v1238
      %v1443 = vpop.f32.mrf.mxu0
      %v1444 = vadd.f32 %v1221, %v1443
      %1445 = vmatmul.f32.gmra.mxu0 %v1241
      %v1446 = vpop.f32.mrf.mxu0
      %v1447 = vadd.f32 %v1226, %v1446
      %1448 = vmatmul.f32.gmra.mxu0 %v1244
      %v1449 = vpop.f32.mrf.mxu0
      %v1450 = vadd.f32 %v1231, %v1449
      %1451 = vdwg.mxu0
      %1452 = vmatpush.msra.mxu0 0.0
      %1453 = vmatpush.msra.mxu0 0.0
      %1454 = vmatpush.msra.mxu0 0.0
      %1455 = vmatpush.msra.mxu0 0.0
      %1456 = vmatpush.msra.mxu0 0.0
      %1457 = vmatpush.msra.mxu0 0.0
      %1458 = vmatpush.msra.mxu0 0.0
      %1459 = vmatpush.msra.mxu0 0.0
      %1460 = vmatpush.msra.mxu0 0.0
      %1461 = vmatpush.msra.mxu0 0.0
      %1462 = vmatpush.msra.mxu0 0.0
      %1463 = vmatpush.msra.mxu0 0.0
      %1464 = vmatpush.msra.mxu0 %v1258
      %1465 = vmatpush.msra.mxu0 %v1199
      %1466 = vmatpush.msra.mxu0 %v1165
      %1467 = vmatpush.msra.mxu0 %v1114
      %1468 = vmatmul.f32.gmra.mxu0 %v1235
      %v1469 = vpop.f32.mrf.mxu0
      %v1470 = vadd.f32 %v1216, %v1469
      %1471 = vmatmul.f32.gmra.mxu0 %v1238
      %v1472 = vpop.f32.mrf.mxu0
      %v1473 = vadd.f32 %v1221, %v1472
      %1474 = vmatmul.f32.gmra.mxu0 %v1241
      %v1475 = vpop.f32.mrf.mxu0
      %v1476 = vadd.f32 %v1226, %v1475
      %1477 = vmatmul.f32.gmra.mxu0 %v1244
      %v1478 = vpop.f32.mrf.mxu0
      %v1479 = vadd.f32 %v1231, %v1478
      %1480 = vdwg.mxu0
      %1481 = vmatpush.msra.mxu0 0.0
      %1482 = vmatpush.msra.mxu0 0.0
      %1483 = vmatpush.msra.mxu0 0.0
      %1484 = vmatpush.msra.mxu0 0.0
      %1485 = vmatpush.msra.mxu0 0.0
      %1486 = vmatpush.msra.mxu0 0.0
      %1487 = vmatpush.msra.mxu0 0.0
      %1488 = vmatpush.msra.mxu0 0.0
      %1489 = vmatpush.msra.mxu0 0.0
      %1490 = vmatpush.msra.mxu0 0.0
      %1491 = vmatpush.msra.mxu0 0.0
      %1492 = vmatpush.msra.mxu0 0.0
      %1493 = vmatpush.msra.mxu0 %v1260
      %1494 = vmatpush.msra.mxu0 %v1200
      %1495 = vmatpush.msra.mxu0 %v1166
      %1496 = vmatpush.msra.mxu0 %v1115
      %1497 = vmatmul.f32.gmra.mxu0 %v1235
      %v1498 = vpop.f32.mrf.mxu0
      %v1499 = vadd.f32 %v1216, %v1498
      %1500 = vmatmul.f32.gmra.mxu0 %v1238
      %v1501 = vpop.f32.mrf.mxu0
      %v1502 = vadd.f32 %v1221, %v1501
      %1503 = vmatmul.f32.gmra.mxu0 %v1241
      %v1504 = vpop.f32.mrf.mxu0
      %v1505 = vadd.f32 %v1226, %v1504
      %1506 = vmatmul.f32.gmra.mxu0 %v1244
      %v1507 = vpop.f32.mrf.mxu0
      %v1508 = vadd.f32 %v1231, %v1507
      %1509 = vdwg.mxu0
      %1510 = vmatpush.msra.mxu0 0.0
      %1511 = vmatpush.msra.mxu0 0.0
      %1512 = vmatpush.msra.mxu0 0.0
      %1513 = vmatpush.msra.mxu0 0.0
      %1514 = vmatpush.msra.mxu0 0.0
      %1515 = vmatpush.msra.mxu0 0.0
      %1516 = vmatpush.msra.mxu0 0.0
      %1517 = vmatpush.msra.mxu0 0.0
      %1518 = vmatpush.msra.mxu0 0.0
      %1519 = vmatpush.msra.mxu0 0.0
      %1520 = vmatpush.msra.mxu0 0.0
      %1521 = vmatpush.msra.mxu0 0.0
      %1522 = vmatpush.msra.mxu0 %v1262
      %1523 = vmatpush.msra.mxu0 %v1201
      %1524 = vmatpush.msra.mxu0 %v1167
      %1525 = vmatpush.msra.mxu0 %v1116
      %1526 = vmatmul.f32.gmra.mxu0 %v1235
      %v1527 = vpop.f32.mrf.mxu0
      %v1528 = vadd.f32 %v1216, %v1527
      %1529 = vmatmul.f32.gmra.mxu0 %v1238
      %v1530 = vpop.f32.mrf.mxu0
      %v1531 = vadd.f32 %v1221, %v1530
      %1532 = vmatmul.f32.gmra.mxu0 %v1241
      %v1533 = vpop.f32.mrf.mxu0
      %v1534 = vadd.f32 %v1226, %v1533
      %1535 = vmatmul.f32.gmra.mxu0 %v1244
      %v1536 = vpop.f32.mrf.mxu0
      %v1537 = vadd.f32 %v1231, %v1536
      %1538 = vdwg.mxu0
      %1539 = vmatpush.msra.mxu0 0.0
      %1540 = vmatpush.msra.mxu0 0.0
      %1541 = vmatpush.msra.mxu0 0.0
      %1542 = vmatpush.msra.mxu0 0.0
      %1543 = vmatpush.msra.mxu0 0.0
      %1544 = vmatpush.msra.mxu0 0.0
      %1545 = vmatpush.msra.mxu0 0.0
      %1546 = vmatpush.msra.mxu0 0.0
      %1547 = vmatpush.msra.mxu0 0.0
      %1548 = vmatpush.msra.mxu0 0.0
      %1549 = vmatpush.msra.mxu0 0.0
      %1550 = vmatpush.msra.mxu0 0.0
      %1551 = vmatpush.msra.mxu0 %v1264
      %1552 = vmatpush.msra.mxu0 %v1202
      %1553 = vmatpush.msra.mxu0 %v1168
      %1554 = vmatpush.msra.mxu0 %v1117
      %1555 = vmatmul.f32.gmra.mxu0 %v1235
      %v1556 = vpop.f32.mrf.mxu0
      %v1557 = vadd.f32 %v1216, %v1556
      %1558 = vmatmul.f32.gmra.mxu0 %v1238
      %v1559 = vpop.f32.mrf.mxu0
      %v1560 = vadd.f32 %v1221, %v1559
      %1561 = vmatmul.f32.gmra.mxu0 %v1241
      %v1562 = vpop.f32.mrf.mxu0
      %v1563 = vadd.f32 %v1226, %v1562
      %1564 = vmatmul.f32.gmra.mxu0 %v1244
      %v1565 = vpop.f32.mrf.mxu0
      %v1566 = vadd.f32 %v1231, %v1565
      %1567 = vdwg.mxu0
      %1568 = vmatpush.msra.mxu0 0.0
      %1569 = vmatpush.msra.mxu0 0.0
      %1570 = vmatpush.msra.mxu0 0.0
      %1571 = vmatpush.msra.mxu0 0.0
      %1572 = vmatpush.msra.mxu0 0.0
      %1573 = vmatpush.msra.mxu0 0.0
      %1574 = vmatpush.msra.mxu0 0.0
      %1575 = vmatpush.msra.mxu0 0.0
      %1576 = vmatpush.msra.mxu0 0.0
      %1577 = vmatpush.msra.mxu0 0.0
      %1578 = vmatpush.msra.mxu0 0.0
      %1579 = vmatpush.msra.mxu0 0.0
      %1580 = vmatpush.msra.mxu0 %v1266
      %1581 = vmatpush.msra.mxu0 %v1203
      %1582 = vmatpush.msra.mxu0 %v1169
      %1583 = vmatpush.msra.mxu0 %v1118
      %1584 = vmatmul.f32.gmra.mxu0 %v1235
      %v1585 = vpop.f32.mrf.mxu0
      %v1586 = vadd.f32 %v1216, %v1585
      %1587 = vmatmul.f32.gmra.mxu0 %v1238
      %v1588 = vpop.f32.mrf.mxu0
      %v1589 = vadd.f32 %v1221, %v1588
      %1590 = vmatmul.f32.gmra.mxu0 %v1241
      %v1591 = vpop.f32.mrf.mxu0
      %v1592 = vadd.f32 %v1226, %v1591
      %1593 = vmatmul.f32.gmra.mxu0 %v1244
      %v1594 = vpop.f32.mrf.mxu0
      %v1595 = vadd.f32 %v1231, %v1594
      %1596 = vdwg.mxu0
      %1597 = vmatpush.msra.mxu0 0.0
      %1598 = vmatpush.msra.mxu0 0.0
      %1599 = vmatpush.msra.mxu0 0.0
      %1600 = vmatpush.msra.mxu0 0.0
      %1601 = vmatpush.msra.mxu0 0.0
      %1602 = vmatpush.msra.mxu0 0.0
      %1603 = vmatpush.msra.mxu0 0.0
      %1604 = vmatpush.msra.mxu0 0.0
      %1605 = vmatpush.msra.mxu0 0.0
      %1606 = vmatpush.msra.mxu0 0.0
      %1607 = vmatpush.msra.mxu0 0.0
      %1608 = vmatpush.msra.mxu0 0.0
      %1609 = vmatpush.msra.mxu0 %v1268
      %1610 = vmatpush.msra.mxu0 %v1204
      %1611 = vmatpush.msra.mxu0 %v1170
      %1612 = vmatpush.msra.mxu0 %v1119
      %1613 = vmatmul.f32.gmra.mxu0 %v1235
      %v1614 = vpop.f32.mrf.mxu0
      %v1615 = vadd.f32 %v1216, %v1614
      %1616 = vmatmul.f32.gmra.mxu0 %v1238
      %v1617 = vpop.f32.mrf.mxu0
      %v1618 = vadd.f32 %v1221, %v1617
      %1619 = vmatmul.f32.gmra.mxu0 %v1241
      %v1620 = vpop.f32.mrf.mxu0
      %v1621 = vadd.f32 %v1226, %v1620
      %1622 = vmatmul.f32.gmra.mxu0 %v1244
      %v1623 = vpop.f32.mrf.mxu0
      %v1624 = vadd.f32 %v1231, %v1623
      %1625 = vdwg.mxu0
      %1626 = vmatpush.msra.mxu0 0.0
      %1627 = vmatpush.msra.mxu0 0.0
      %1628 = vmatpush.msra.mxu0 0.0
      %1629 = vmatpush.msra.mxu0 0.0
      %1630 = vmatpush.msra.mxu0 0.0
      %1631 = vmatpush.msra.mxu0 0.0
      %1632 = vmatpush.msra.mxu0 0.0
      %1633 = vmatpush.msra.mxu0 0.0
      %1634 = vmatpush.msra.mxu0 0.0
      %1635 = vmatpush.msra.mxu0 0.0
      %1636 = vmatpush.msra.mxu0 0.0
      %1637 = vmatpush.msra.mxu0 0.0
      %1638 = vmatpush.msra.mxu0 %v1270
      %1639 = vmatpush.msra.mxu0 %v1205
      %1640 = vmatpush.msra.mxu0 %v1171
      %1641 = vmatpush.msra.mxu0 %v1120
      %1642 = vmatmul.f32.gmra.mxu0 %v1235
      %v1643 = vpop.f32.mrf.mxu0
      %v1644 = vadd.f32 %v1216, %v1643
      %1645 = vmatmul.f32.gmra.mxu0 %v1238
      %v1646 = vpop.f32.mrf.mxu0
      %v1647 = vadd.f32 %v1221, %v1646
      %1648 = vmatmul.f32.gmra.mxu0 %v1241
      %v1649 = vpop.f32.mrf.mxu0
      %v1650 = vadd.f32 %v1226, %v1649
      %1651 = vmatmul.f32.gmra.mxu0 %v1244
      %v1652 = vpop.f32.mrf.mxu0
      %v1653 = vadd.f32 %v1231, %v1652
      %1654 = vdwg.mxu0
      %1655 = vmatpush.msra.mxu0 0.0
      %1656 = vmatpush.msra.mxu0 0.0
      %1657 = vmatpush.msra.mxu0 0.0
      %1658 = vmatpush.msra.mxu0 0.0
      %1659 = vmatpush.msra.mxu0 0.0
      %1660 = vmatpush.msra.mxu0 0.0
      %1661 = vmatpush.msra.mxu0 0.0
      %1662 = vmatpush.msra.mxu0 0.0
      %1663 = vmatpush.msra.mxu0 0.0
      %1664 = vmatpush.msra.mxu0 0.0
      %1665 = vmatpush.msra.mxu0 0.0
      %1666 = vmatpush.msra.mxu0 0.0
      %1667 = vmatpush.msra.mxu0 %v1272
      %1668 = vmatpush.msra.mxu0 %v1206
      %1669 = vmatpush.msra.mxu0 %v1172
      %1670 = vmatpush.msra.mxu0 %v1121
      %1671 = vmatmul.f32.gmra.mxu0 %v1235
      %v1672 = vpop.f32.mrf.mxu0
      %v1673 = vadd.f32 %v1216, %v1672
      %1674 = vmatmul.f32.gmra.mxu0 %v1238
      %v1675 = vpop.f32.mrf.mxu0
      %v1676 = vadd.f32 %v1221, %v1675
      %1677 = vmatmul.f32.gmra.mxu0 %v1241
      %v1678 = vpop.f32.mrf.mxu0
      %v1679 = vadd.f32 %v1226, %v1678
      %1680 = vmatmul.f32.gmra.mxu0 %v1244
      %v1681 = vpop.f32.mrf.mxu0
      %v1682 = vadd.f32 %v1231, %v1681
      %1683 = vdwg.mxu0
      %1684 = vmatpush.msra.mxu0 0.0
      %1685 = vmatpush.msra.mxu0 0.0
      %1686 = vmatpush.msra.mxu0 0.0
      %1687 = vmatpush.msra.mxu0 0.0
      %1688 = vmatpush.msra.mxu0 0.0
      %1689 = vmatpush.msra.mxu0 0.0
      %1690 = vmatpush.msra.mxu0 0.0
      %1691 = vmatpush.msra.mxu0 0.0
      %1692 = vmatpush.msra.mxu0 0.0
      %1693 = vmatpush.msra.mxu0 0.0
      %1694 = vmatpush.msra.mxu0 0.0
      %1695 = vmatpush.msra.mxu0 0.0
      %1696 = vmatpush.msra.mxu0 %v1274
      %1697 = vmatpush.msra.mxu0 %v1207
      %1698 = vmatpush.msra.mxu0 %v1173
      %1699 = vmatpush.msra.mxu0 %v1122
      %1700 = vmatmul.f32.gmra.mxu0 %v1235
      %v1701 = vpop.f32.mrf.mxu0
      %v1702 = vadd.f32 %v1216, %v1701
      %1703 = vmatmul.f32.gmra.mxu0 %v1238
      %v1704 = vpop.f32.mrf.mxu0
      %v1705 = vadd.f32 %v1221, %v1704
      %1706 = vmatmul.f32.gmra.mxu0 %v1241
      %v1707 = vpop.f32.mrf.mxu0
      %v1708 = vadd.f32 %v1226, %v1707
      %1709 = vmatmul.f32.gmra.mxu0 %v1244
      %v1710 = vpop.f32.mrf.mxu0
      %v1711 = vadd.f32 %v1231, %v1710
      %1712 = vdwg.mxu0
      %1713 = vmatpush.msra.mxu0 0.0
      %1714 = vmatpush.msra.mxu0 0.0
      %1715 = vmatpush.msra.mxu0 0.0
      %1716 = vmatpush.msra.mxu0 0.0
      %1717 = vmatpush.msra.mxu0 0.0
      %1718 = vmatpush.msra.mxu0 0.0
      %1719 = vmatpush.msra.mxu0 0.0
      %1720 = vmatpush.msra.mxu0 0.0
      %1721 = vmatpush.msra.mxu0 0.0
      %1722 = vmatpush.msra.mxu0 0.0
      %1723 = vmatpush.msra.mxu0 0.0
      %1724 = vmatpush.msra.mxu0 0.0
      %1725 = vmatpush.msra.mxu0 %v1276
      %1726 = vmatpush.msra.mxu0 %v1208
      %1727 = vmatpush.msra.mxu0 %v1174
      %1728 = vmatpush.msra.mxu0 %v1123
      %1729 = vmatmul.f32.gmra.mxu0 %v1235
      %v1730 = vpop.f32.mrf.mxu0
      %v1731 = vadd.f32 %v1216, %v1730
      %1732 = vmatmul.f32.gmra.mxu0 %v1238
      %v1733 = vpop.f32.mrf.mxu0
      %v1734 = vadd.f32 %v1221, %v1733
      %1735 = vmatmul.f32.gmra.mxu0 %v1241
      %v1736 = vpop.f32.mrf.mxu0
      %v1737 = vadd.f32 %v1226, %v1736
      %1738 = vmatmul.f32.gmra.mxu0 %v1244
      %v1739 = vpop.f32.mrf.mxu0
      %v1740 = vadd.f32 %v1231, %v1739
      %1741 = vdwg.mxu0
      %1742 = vst [vmem:[%s206] sm:$0xff] %v1296
      %1743 = vst [vmem:[%s206 + $0x8] sm:$0xff] %v1325
      %1744 = vst [vmem:[%s206 + $0x10] sm:$0xff] %v1354
      %1745 = vst [vmem:[%s206 + $0x18] sm:$0xff] %v1383
      %1746 = vst [vmem:[%s206 + $0x20] sm:$0xff] %v1412
      %1747 = vst [vmem:[%s206 + $0x28] sm:$0xff] %v1441
      %1748 = vst [vmem:[%s206 + $0x30] sm:$0xff] %v1470
      %1749 = vst [vmem:[%s206 + $0x38] sm:$0xff] %v1499
      %1750 = vst [vmem:[%s206 + $0x40] sm:$0xff] %v1528
      %1751 = vst [vmem:[%s206 + $0x48] sm:$0xff] %v1557
      %1752 = vst [vmem:[%s206 + $0x50] sm:$0xff] %v1586
      %1753 = vst [vmem:[%s206 + $0x58] sm:$0xff] %v1615
      %1754 = vst [vmem:[%s206 + $0x60] sm:$0xff] %v1644
      %1755 = vst [vmem:[%s206 + $0x68] sm:$0xff] %v1673
      %1756 = vst [vmem:[%s206 + $0x70] sm:$0xff] %v1702
      %1757 = vst [vmem:[%s206 + $0x78] sm:$0xff] %v1731
      %1758 = vst [vmem:[%s206 + $0x80] sm:$0xff] %v1299
      %1759 = vst [vmem:[%s206 + $0x88] sm:$0xff] %v1328
      %1760 = vst [vmem:[%s206 + $0x90] sm:$0xff] %v1357
      %1761 = vst [vmem:[%s206 + $0x98] sm:$0xff] %v1386
      %1762 = vst [vmem:[%s206 + $0xa0] sm:$0xff] %v1415
      %1763 = vst [vmem:[%s206 + $0xa8] sm:$0xff] %v1444
      %1764 = vst [vmem:[%s206 + $0xb0] sm:$0xff] %v1473
      %1765 = vst [vmem:[%s206 + $0xb8] sm:$0xff] %v1502
      %1766 = vst [vmem:[%s206 + $0xc0] sm:$0xff] %v1531
      %1767 = vst [vmem:[%s206 + $0xc8] sm:$0xff] %v1560
      %1768 = vst [vmem:[%s206 + $0xd0] sm:$0xff] %v1589
      %1769 = vst [vmem:[%s206 + $0xd8] sm:$0xff] %v1618
      %1770 = vst [vmem:[%s206 + $0xe0] sm:$0xff] %v1647
      %1771 = vst [vmem:[%s206 + $0xe8] sm:$0xff] %v1676
      %1772 = vst [vmem:[%s206 + $0xf0] sm:$0xff] %v1705
      %1773 = vst [vmem:[%s206 + $0xf8] sm:$0xff] %v1734
      %1774 = vst [vmem:[%s206 + $0x100] sm:$0xff] %v1302
      %1775 = vst [vmem:[%s206 + $0x108] sm:$0xff] %v1331
      %1776 = vst [vmem:[%s206 + $0x110] sm:$0xff] %v1360
      %1777 = vst [vmem:[%s206 + $0x118] sm:$0xff] %v1389
      %1778 = vst [vmem:[%s206 + $0x120] sm:$0xff] %v1418
      %1779 = vst [vmem:[%s206 + $0x128] sm:$0xff] %v1447
      %1780 = vst [vmem:[%s206 + $0x130] sm:$0xff] %v1476
      %1781 = vst [vmem:[%s206 + $0x138] sm:$0xff] %v1505
      %1782 = vst [vmem:[%s206 + $0x140] sm:$0xff] %v1534
      %1783 = vst [vmem:[%s206 + $0x148] sm:$0xff] %v1563
      %1784 = vst [vmem:[%s206 + $0x150] sm:$0xff] %v1592
      %1785 = vst [vmem:[%s206 + $0x158] sm:$0xff] %v1621
      %1786 = vst [vmem:[%s206 + $0x160] sm:$0xff] %v1650
      %1787 = vst [vmem:[%s206 + $0x168] sm:$0xff] %v1679
      %1788 = vst [vmem:[%s206 + $0x170] sm:$0xff] %v1708
      %1789 = vst [vmem:[%s206 + $0x178] sm:$0xff] %v1737
      %1790 = vst [vmem:[%s206 + $0x180] sm:$0xff] %v1305
      %1791 = vst [vmem:[%s206 + $0x188] sm:$0xff] %v1334
      %1792 = vst [vmem:[%s206 + $0x190] sm:$0xff] %v1363
      %1793 = vst [vmem:[%s206 + $0x198] sm:$0xff] %v1392
      %1794 = vst [vmem:[%s206 + $0x1a0] sm:$0xff] %v1421
      %1795 = vst [vmem:[%s206 + $0x1a8] sm:$0xff] %v1450
      %1796 = vst [vmem:[%s206 + $0x1b0] sm:$0xff] %v1479
      %1797 = vst [vmem:[%s206 + $0x1b8] sm:$0xff] %v1508
      %1798 = vst [vmem:[%s206 + $0x1c0] sm:$0xff] %v1537
      %1799 = vst [vmem:[%s206 + $0x1c8] sm:$0xff] %v1566
      %1800 = vst [vmem:[%s206 + $0x1d0] sm:$0xff] %v1595
      %1801 = vst [vmem:[%s206 + $0x1d8] sm:$0xff] %v1624
      %1802 = vst [vmem:[%s206 + $0x1e0] sm:$0xff] %v1653
      %1803 = vst [vmem:[%s206 + $0x1e8] sm:$0xff] %v1682
      %1804 = vst [vmem:[%s206 + $0x1f0] sm:$0xff] %v1711
      %1805 = vst [vmem:[%s206 + $0x1f8] sm:$0xff] %v1740
      %s1806 = smul.u32 16, %s19
      %p1807 = scmp.lt.s32.totalorder %s18, 1
      %s1808 = scalar_select %p1807, %s18, 1
      %p1809 = scmp.lt.s32.totalorder %s1806, 15
      %s1810 = scalar_select %p1809, %s1806, 15
      %s1811 = smul.addr %s1808, 64
      %s1812 = sadd.s32 %s1810, %s1811
      %s1813 = smul.addr %s1812, 8
      %s1814 = scalar_lea.vmem %s3, %s1813
      // Predicated region
      $region33: #{conv_layer.1} parent=31 // pred_check
        %p1815 = pneg %p116
      $region34: #{conv_layer.1} parent=31 // pred_check_branch
        %1817 = sbr.rel (%p1815) target = $region36
      $region35: #{conv_layer.1} parent=31 // pred_region
        %s1818 = smul.u32 16, %s19
      $region36: #{conv_layer.1} parent=31 // pred_fallthru
        _
    $region32: #{conv_layer.1} parent=5 // pred_fallthru
      _
    %p1819 = scmp.le.s32.totalorder 2, %s9
    // Predicated region
    $region37: #{conv_layer.1} parent=5 // pred_check
      %p1820 = pneg %p1819
    $region38: #{conv_layer.1} parent=5 // pred_check_branch
      %1822 = sbr.rel (%p1820) target = $region40
    $region39: #{conv_layer.1} parent=5 // pred_region
      %s1823 = ssub.s32 %s9, 2
      // Predicated region
      $region41: #{conv_layer.1} parent=39 // pred_check
        %p1824 = pneg %p122
      $region42: #{conv_layer.1} parent=39 // pred_check_branch
        %1826 = sbr.rel (%p1824) target = $region44
      $region43: #{conv_layer.1} parent=39 // pred_region
        %s1827 = smul.u32 16, %s21
        %p1828 = scmp.lt.s32.totalorder %s20, 1
        %s1829 = scalar_select %p1828, %s20, 1
        %p1830 = scmp.lt.s32.totalorder %s1827, 15
        %s1831 = scalar_select %p1830, %s1827, 15
        %s1832 = smul.addr %s1829, 64
        %s1833 = sadd.s32 %s1831, %s1832
        %s1834 = smul.addr %s1833, 8
        %s1835 = scalar_lea.vmem %s3, %s1834
      $region44: #{conv_layer.1} parent=39 // pred_fallthru
        _
    $region40: #{conv_layer.1} parent=5 // pred_fallthru
      _
  $region6: #{conv_layer.1} parent=0 // loop_footer
    %s13 = sadd.s32 1, %s9
  $region7: #{conv_layer.1} parent=0 // loop_footer_branch
    %8 = sbr.rel target = $region3
  $region8: #{conv_layer.1} parent=0 // loop_exit
    _

</llo_original>
